<compile_context>
chip_gen: v6e
topology: v6e:2x2x1
jax: 0.10.0
libtpu: 0.0.40
codegen_flags: <defaults>
</compile_context>

<pallas_src>
import jax
import jax.numpy as jnp
from jax.experimental import pallas as pl
from jax.experimental.pallas import tpu as pltpu

_MiB = 1024 * 1024


def _ipd_kernel(z_ref, zt_ref, out_ref):
    # z_ref:  (tm, D)  row tile of z
    # zt_ref: (D, tn)  slab of z.T (pre-transposed in the wrapper; MXU-native RHS)
    logits = jnp.dot(z_ref[...], zt_ref[...], preferred_element_type=jnp.float32)
    # sigmoid(x) == 0.5 * (tanh(x/2) + 1): single EUP push per vreg instead of
    # exp + exact divide, so it overlaps with the dominant HBM writeback.
    out_ref[...] = (0.5 * jnp.tanh(0.5 * logits) + 0.5).astype(out_ref.dtype)


def _round_up(x, m):
    return (x + m - 1) // m * m


def _default_vmem_sizes():
    """Per-generation (working-set budget, scoped vmem limit) in bytes."""
    cap = None
    try:
        cap = int(pltpu.get_tpu_info().vmem_capacity_bytes)
    except Exception:
        cap = None
    if cap is not None and cap >= 96 * _MiB:
        # 128-MiB parts (v5e / v6e): use most of VMEM for big tiles.
        return 96 * _MiB, 110 * _MiB
    # 64-MiB parts (v7x) or unknown generation: stay conservative.
    return 40 * _MiB, 48 * _MiB


def inner_product_decoder(
    z,
    *,
    dropout=0.0,
    training=False,
    rng=None,
    out_dtype=None,          # tip: jnp.bfloat16 halves the dominant N x N writeback
    matmul_dtype=None,       # None -> bf16 inputs (f32 accumulation) when D >= 256
    vmem_budget_bytes=None,
    vmem_limit_bytes=None,
    trim_padding=True,       # False skips the extra XLA slice copy when N % 128 != 0
):
    """adj = sigmoid(dropout(z) @ dropout(z).T).

    z: (N, D) float array. Non-aligned N is handled by zero-padding the node
    dimension; padded rows/cols hold sigmoid(0) = 0.5 and are sliced off
    unless trim_padding=False.
    """
    # TODO(synk): dropout is applied in the XLA wrapper on the (N, D) input
    # rather than fused into the kernel (negligible vs the N^2 kernel cost).
    N, D = z.shape
    out_dtype = jnp.dtype(out_dtype) if out_dtype is not None else jnp.dtype(z.dtype)
    if matmul_dtype is None:
        matmul_dtype = jnp.bfloat16 if D >= 256 else z.dtype
    matmul_dtype = jnp.dtype(matmul_dtype)
    z_bytes = matmul_dtype.itemsize
    o_bytes = out_dtype.itemsize

    if vmem_budget_bytes is None or vmem_limit_bytes is None:
        dflt_budget, dflt_limit = _default_vmem_sizes()
        vmem_budget_bytes = vmem_budget_bytes or dflt_budget
        vmem_limit_bytes = vmem_limit_bytes or dflt_limit

    # F.dropout(z, p, training) parity (stochastic mask + 1/(1-p) scale).
    if training and dropout > 0.0:
        if rng is None:
            raise ValueError("training=True with dropout > 0 requires an rng key")
        keep = jax.random.bernoulli(rng, 1.0 - dropout, z.shape)
        z = jnp.where(keep, z / (1.0 - dropout), 0.0).astype(z.dtype)

    # Pad node dim: at least a multiple of 128 (sublane-aligned row tiles,
    # lane-dense unmasked output stores). If a modest amount of extra padding
    # reaches a multiple of 512, take it - unlocks tm >= 512 row slabs.
    Np = max(_round_up(N, 128), 128)
    if Np % 512 != 0:
        Np512 = _round_up(N, 512)
        if Np512 - Np <= max(128, Np // 8):
            Np = Np512

    if Np != N:
        z_p = jnp.zeros((Np, D), z.dtype).at[:N].set(z)
    else:
        z_p = z
    z_p = z_p.astype(matmul_dtype)
    zT = z_p.T  # one-time transpose in the wrapper; kernel never transposes

    cost = pl.CostEstimate(
        flops=2 * Np * Np * D,
        transcendentals=Np * Np,                       # one tanh per output element
        bytes_accessed=2 * Np * D * z_bytes + Np * Np * o_bytes,
    )

    def run(grid, in_specs, out_specs, dim_sem):
        return pl.pallas_call(
            _ipd_kernel,
            out_shape=jax.ShapeDtypeStruct((Np, Np), out_dtype),
            grid_spec=pltpu.PrefetchScalarGridSpec(
                num_scalar_prefetch=0,
                grid=grid,
                in_specs=in_specs,
                out_specs=out_specs,
            ),
            compiler_params=pltpu.CompilerParams(
                dimension_semantics=dim_sem,
                vmem_limit_bytes=vmem_limit_bytes,
            ),
            cost_estimate=cost,
        )(z_p, zT)

    adj = None
    zt_resident_bytes = Np * D * z_bytes  # single-buffered resident z.T (pl.Buffered(1))

    # Preferred path: 1-D grid over row slabs, z.T resident across the grid,
    # (tm, Np) lane-dense output slab (unmasked vector stores).
    if zt_resident_bytes <= vmem_budget_bytes // 2:
        tm = None
        for cand in (2048, 1024, 512, 256, 128):
            if cand > Np or Np % cand != 0:
                continue
            if Np // cand < 2 and Np > 128:
                # Keep >= 2 grid steps: v7x megacore sharding + pipelining overlap.
                continue
            working = (2 * cand * Np * o_bytes      # double-buffered output slab
                       + 2 * cand * D * z_bytes     # double-buffered z row tile
                       + zt_resident_bytes)         # resident z.T (single buffer)
            if working <= vmem_budget_bytes:
                tm = cand
                break

        if tm is not None:
            zrow_spec = pl.BlockSpec((tm, D), lambda i: (i, 0))
            out_spec = pl.BlockSpec((tm, Np), lambda i: (i, 0))
            zt_spec_variants = []
            try:
                # z.T block index never changes -> single-buffer it.
                zt_spec_variants.append(
                    pl.BlockSpec((D, Np), lambda i: (0, 0),
                                 pipeline_mode=pl.Buffered(1)))
            except Exception:
                pass
            zt_spec_variants.append(pl.BlockSpec((D, Np), lambda i: (0, 0)))
            for zt_spec in zt_spec_variants:
                try:
                    adj = run(
                        grid=(Np // tm,),
                        in_specs=[zrow_spec, zt_spec],
                        out_specs=out_spec,
                        dim_sem=("parallel",),
                    )
                    break
                except Exception:
                    adj = None

    # Fallback: 2-D big-tile grid (z.T too large to stay resident, or the
    # preferred path failed to lower on this jax/TPU combination).
    if adj is None:
        pick = None
        for tm in (512, 256, 128):
            if tm > Np or Np % tm != 0:
                continue
            for tn in (2048, 1024, 512, 256, 128):
                if tn > Np or Np % tn != 0:
                    continue
                working = (2 * tm * D * z_bytes + 2 * D * tn * z_bytes
                           + 2 * tm * tn * o_bytes)
                if working <= vmem_budget_bytes:
                    pick = (tm, tn)
                    break
            if pick is not None:
                break
        tm, tn = pick if pick is not None else (128, 128)
        adj = run(
            grid=(Np // tm, Np // tn),
            in_specs=[
                pl.BlockSpec((tm, D), lambda i, j: (i, 0)),
                pl.BlockSpec((D, tn), lambda i, j: (0, j)),
            ],
            out_specs=pl.BlockSpec((tm, tn), lambda i, j: (i, j)),
            dim_sem=("parallel", "parallel"),
        )

    if trim_padding and Np != N:
        # NOTE: separate XLA copy (~Np^2 read + N^2 write). Pass
        # trim_padding=False (pad region = 0.5) to skip it when the consumer
        # can mask/ignore rows/cols >= N instead.
        adj = adj[:N, :N]
    return adj


def inner_product_decoder_ref(z):
    return jax.nn.sigmoid(z @ z.T)


if __name__ == "__main__":
    key = jax.random.PRNGKey(0)
    N, D = 256, 32  # small synthetic shapes: 256 nodes, hidden=32
    z = jax.random.normal(key, (N, D), dtype=jnp.float32)

    adj = inner_product_decoder(z)
    adj = jax.block_until_ready(adj)

    ref = inner_product_decoder_ref(z)
    assert adj.shape == (N, N)
    assert jnp.allclose(adj, ref, atol=1e-5, rtol=1e-5)

    print("KERNEL_OK")
</pallas_src>

<mosaic_0001>
module attributes {stable_mosaic.version = 11 : i64} {
  func.func @_ipd_kernel(%arg0: i32, %arg1: memref<128x32xf32, #tpu.memory_space<vmem>>, %arg2: memref<32x256xf32, #tpu.memory_space<vmem>>, %arg3: memref<128x256xf32, #tpu.memory_space<vmem>>) attributes {dimension_semantics = [#tpu.dimension_semantics<parallel>], iteration_bounds = array<i64: 2>, scalar_prefetch = 0 : i64, scratch_operands = 0 : i64, tpu.core_type = #tpu.core_type<tc>, window_params = [{transform_indices = @transform_0, window_bounds = array<i64: 128, 32>}, {pipeline_mode = #tpu.pipeline_mode<synchronous>, transform_indices = @transform_1, window_bounds = array<i64: 32, 256>}, {transform_indices = @transform_2, window_bounds = array<i64: 128, 256>}]} {
    %c0 = arith.constant 0 : index
    %c0_0 = arith.constant 0 : index
    %0 = vector.load %arg1[%c0, %c0_0] : memref<128x32xf32, #tpu.memory_space<vmem>>, vector<128x32xf32>
    %c0_1 = arith.constant 0 : index
    %c0_2 = arith.constant 0 : index
    %1 = vector.load %arg2[%c0_1, %c0_2] : memref<32x256xf32, #tpu.memory_space<vmem>>, vector<32x256xf32>
    %cst = arith.constant dense<0.000000e+00> : vector<128x256xf32>
    %2 = tpu.matmul %0, %1, %cst {dimension_numbers = #tpu.dot_dimension_numbers<[1], [0], [0], [1], [0, 0, 1, 1], [], []>} : vector<128x32xf32>, vector<32x256xf32>, vector<128x256xf32> -> vector<128x256xf32>
    %cst_3 = arith.constant 5.000000e-01 : f32
    %3 = vector.broadcast %cst_3 : f32 to vector<128x256xf32>
    %4 = arith.mulf %3, %2 : vector<128x256xf32>
    %5 = math.tanh %4 : vector<128x256xf32>
    %cst_4 = arith.constant 5.000000e-01 : f32
    %6 = vector.broadcast %cst_4 : f32 to vector<128x256xf32>
    %7 = arith.mulf %6, %5 : vector<128x256xf32>
    %cst_5 = arith.constant 5.000000e-01 : f32
    %8 = vector.broadcast %cst_5 : f32 to vector<128x256xf32>
    %9 = arith.addf %7, %8 : vector<128x256xf32>
    %c0_6 = arith.constant 0 : index
    %c0_7 = arith.constant 0 : index
    %10 = vector.load %arg3[%c0_6, %c0_7] : memref<128x256xf32, #tpu.memory_space<vmem>>, vector<128x256xf32>
    tpu.vector_store %arg3[%c0_6, %c0_7], %9 {strides = array<i32>} : memref<128x256xf32, #tpu.memory_space<vmem>>, vector<128x256xf32>,
    return
  }
  func.func @transform_0(%arg0: i32) -> (i32, i32) {
    %c0_i32 = arith.constant 0 : i32
    %c0_i32_0 = arith.constant 0 : i32
    return %arg0, %c0_i32 : i32, i32
  }
  func.func @transform_1(%arg0: i32) -> (i32, i32) {
    %c0_i32 = arith.constant 0 : i32
    %c0_i32_0 = arith.constant 0 : i32
    %c0_i32_1 = arith.constant 0 : i32
    return %c0_i32, %c0_i32_0 : i32, i32
  }
  func.func @transform_2(%arg0: i32) -> (i32, i32) {
    %c0_i32 = arith.constant 0 : i32
    %c0_i32_0 = arith.constant 0 : i32
    return %arg0, %c0_i32 : i32, i32
  }
}

module attributes {stable_mosaic.version = 11 : i64} {
  func.func @_ipd_kernel(%arg0: i32, %arg1: memref<128x32xf32, #tpu.memory_space<vmem>>, %arg2: memref<32x256xf32, #tpu.memory_space<vmem>>, %arg3: memref<128x256xf32, #tpu.memory_space<vmem>>) attributes {dimension_semantics = [#tpu.dimension_semantics<parallel>], iteration_bounds = array<i64: 2>, scalar_prefetch = 0 : i64, scratch_operands = 0 : i64, tpu.core_type = #tpu.core_type<tc>, window_params = [{transform_indices = @transform_0, window_bounds = array<i64: 128, 32>}, {pipeline_mode = #tpu.pipeline_mode<synchronous>, transform_indices = @transform_1, window_bounds = array<i64: 32, 256>}, {transform_indices = @transform_2, window_bounds = array<i64: 128, 256>}]} {
    %c0 = arith.constant 0 : index
    %c0_0 = arith.constant 0 : index
    %0 = vector.load %arg1[%c0, %c0_0] : memref<128x32xf32, #tpu.memory_space<vmem>>, vector<128x32xf32>
    %c0_1 = arith.constant 0 : index
    %c0_2 = arith.constant 0 : index
    %1 = vector.load %arg2[%c0_1, %c0_2] : memref<32x256xf32, #tpu.memory_space<vmem>>, vector<32x256xf32>
    %cst = arith.constant dense<0.000000e+00> : vector<128x256xf32>
    %2 = tpu.matmul %0, %1, %cst {dimension_numbers = #tpu.dot_dimension_numbers<[1], [0], [0], [1], [0, 0, 1, 1], [], []>} : vector<128x32xf32>, vector<32x256xf32>, vector<128x256xf32> -> vector<128x256xf32>
    %cst_3 = arith.constant 5.000000e-01 : f32
    %3 = vector.broadcast %cst_3 : f32 to vector<128x256xf32>
    %4 = arith.mulf %3, %2 : vector<128x256xf32>
    %5 = math.tanh %4 : vector<128x256xf32>
    %cst_4 = arith.constant 5.000000e-01 : f32
    %6 = vector.broadcast %cst_4 : f32 to vector<128x256xf32>
    %7 = arith.mulf %6, %5 : vector<128x256xf32>
    %cst_5 = arith.constant 5.000000e-01 : f32
    %8 = vector.broadcast %cst_5 : f32 to vector<128x256xf32>
    %9 = arith.addf %7, %8 : vector<128x256xf32>
    %c0_6 = arith.constant 0 : index
    %c0_7 = arith.constant 0 : index
    %10 = vector.load %arg3[%c0_6, %c0_7] : memref<128x256xf32, #tpu.memory_space<vmem>>, vector<128x256xf32>
    tpu.vector_store %arg3[%c0_6, %c0_7], %9 {strides = array<i32>} : memref<128x256xf32, #tpu.memory_space<vmem>>, vector<128x256xf32>,
    return
  }
  func.func @transform_0(%arg0: i32) -> (i32, i32) {
    %c0_i32 = arith.constant 0 : i32
    %c0_i32_0 = arith.constant 0 : i32
    return %arg0, %c0_i32 : i32, i32
  }
  func.func @transform_1(%arg0: i32) -> (i32, i32) {
    %c0_i32 = arith.constant 0 : i32
    %c0_i32_0 = arith.constant 0 : i32
    %c0_i32_1 = arith.constant 0 : i32
    return %c0_i32, %c0_i32_0 : i32, i32
  }
  func.func @transform_2(%arg0: i32) -> (i32, i32) {
    %c0_i32 = arith.constant 0 : i32
    %c0_i32_0 = arith.constant 0 : i32
    return %arg0, %c0_i32 : i32, i32
  }
}

module attributes {stable_mosaic.version = 11 : i64} {
  func.func @_ipd_kernel(%arg0: i32, %arg1: i32, %arg2: memref<256x32xf32, #tpu.memory_space<vmem>>, %arg3: memref<32x256xf32, #tpu.memory_space<vmem>>, %arg4: memref<256x256xf32, #tpu.memory_space<vmem>>) attributes {dimension_semantics = [#tpu.dimension_semantics<parallel>, #tpu.dimension_semantics<parallel>], iteration_bounds = array<i64: 1, 1>, scalar_prefetch = 0 : i64, scratch_operands = 0 : i64, tpu.core_type = #tpu.core_type<tc>, window_params = [{transform_indices = @transform_0, window_bounds = array<i64: 256, 32>}, {transform_indices = @transform_1, window_bounds = array<i64: 32, 256>}, {transform_indices = @transform_2, window_bounds = array<i64: 256, 256>}]} {
    %c0 = arith.constant 0 : index
    %c0_0 = arith.constant 0 : index
    %0 = vector.load %arg2[%c0, %c0_0] : memref<256x32xf32, #tpu.memory_space<vmem>>, vector<256x32xf32>
    %c0_1 = arith.constant 0 : index
    %c0_2 = arith.constant 0 : index
    %1 = vector.load %arg3[%c0_1, %c0_2] : memref<32x256xf32, #tpu.memory_space<vmem>>, vector<32x256xf32>
    %cst = arith.constant dense<0.000000e+00> : vector<256x256xf32>
    %2 = tpu.matmul %0, %1, %cst {dimension_numbers = #tpu.dot_dimension_numbers<[1], [0], [0], [1], [0, 0, 1, 1], [], []>} : vector<256x32xf32>, vector<32x256xf32>, vector<256x256xf32> -> vector<256x256xf32>
    %cst_3 = arith.constant 5.000000e-01 : f32
    %3 = vector.broadcast %cst_3 : f32 to vector<256x256xf32>
    %4 = arith.mulf %3, %2 : vector<256x256xf32>
    %5 = math.tanh %4 : vector<256x256xf32>
    %cst_4 = arith.constant 5.000000e-01 : f32
    %6 = vector.broadcast %cst_4 : f32 to vector<256x256xf32>
    %7 = arith.mulf %6, %5 : vector<256x256xf32>
    %cst_5 = arith.constant 5.000000e-01 : f32
    %8 = vector.broadcast %cst_5 : f32 to vector<256x256xf32>
    %9 = arith.addf %7, %8 : vector<256x256xf32>
    %c0_6 = arith.constant 0 : index
    %c0_7 = arith.constant 0 : index
    %10 = vector.load %arg4[%c0_6, %c0_7] : memref<256x256xf32, #tpu.memory_space<vmem>>, vector<256x256xf32>
    tpu.vector_store %arg4[%c0_6, %c0_7], %9 {strides = array<i32>} : memref<256x256xf32, #tpu.memory_space<vmem>>, vector<256x256xf32>,
    return
  }
  func.func @transform_0(%arg0: i32, %arg1: i32) -> (i32, i32) {
    %c0_i32 = arith.constant 0 : i32
    %c0_i32_0 = arith.constant 0 : i32
    return %arg0, %c0_i32 : i32, i32
  }
  func.func @transform_1(%arg0: i32, %arg1: i32) -> (i32, i32) {
    %c0_i32 = arith.constant 0 : i32
    %c0_i32_0 = arith.constant 0 : i32
    return %c0_i32, %arg1 : i32, i32
  }
  func.func @transform_2(%arg0: i32, %arg1: i32) -> (i32, i32) {
    %c0_i32 = arith.constant 0 : i32
    return %arg0, %arg1 : i32, i32
  }
}

</mosaic_0001>

<llo_original>
// kernel: tpu_custom_call.1
$region0: #{tpu_custom_call.1}
  #allocation0 [shape = 'u32[]', space=smem, size = 0x4, offset = 0x4, fixed_abs, tag = 'smem constant byte address 0x4 - core index']
  #allocation1 [shape = 'u32[144,128]{1,0:T(1,128)}', space=vmem, size = 0x12000, scoped, tag = 'internal scratch']
  %s0 = inlined_call_operand.vmem [shape: f32[256,32], index: 0, kind: input, shape index: {}]
  %s1 = inlined_call_operand.vmem [shape: f32[32,256], index: 1, kind: input, shape index: {}]
  %s2 = inlined_call_operand.hbm [shape: f32[256,256], index: 2, kind: output, shape index: {}]
  %s3 = sld [smem:[#allocation0]]
  $region41: #{tpu_custom_call.1} parent=0
    _
  %s5 = ssub.s32 1, %s3
  %s6 = scalar_select 0, %s5, %s3
  $region1: #{tpu_custom_call.1} parent=0
    #allocation2 [shape = 'u8[262144]{0}', space=vmem, size = 0x40000, scoped, tag = 'output window, operand 0']
    #allocation3 [shape = 's32[2]{0}', space=sflag, size = 0x8, scoped, tag = 'scoped memory for tpu_custom_call.1']
    %7 = vsyncpa [#allocation3], 0
    %s8 = scalar_lea.sflag [#allocation3], 1
    %9 = vsyncpa %s8, 0
    loop: start=0, step=1, limit=4
    $region2: #{tpu_custom_call.1} parent=1 // loop_pre_header
      _
    $region3: #{tpu_custom_call.1} parent=1 // loop_header
      %s11 = sphi 0, %s15
      %p12 = scmp.ge.s32.totalorder %s11, 4
      %s21 = sphi 0, %s23
      %s24 = sphi 0, %s21
      %s25 = sphi 0, %s24
      %s41 = sphi 0, %s25
      %s45 = sphi 0, %s45
      %s47 = sphi 0, %s45
      %s48 = sphi 0, %s47
      %s62 = sphi 0, %s48
      %s68 = sphi 0, %s70
      %s71 = sphi 0, %s68
      %s72 = sphi 0, %s71
      %s88 = sphi 0, %s72
    $region4: #{tpu_custom_call.1} parent=1 // loop_header_branch
      %14 = sbr.rel (%p12) target = $region8
    $region5: #{tpu_custom_call.1} parent=1 // loop_body
      %s16 = ssub.s32 %s11, 1
      %s17 = ssub.s32 %s11, 2
      %s18 = sadd.s32 %s11, 1
      %s19 = ssub.s32 %s11, %s18
      %p20 = scmp.eq.s32.totalorder %s19, 0
      %s22 = sadd.s32 %s21, 1
      %s23 = scalar_select %p20, %s21, %s22
      %p26 = pneg %p20
      %p27 = scmp.eq.s32.totalorder %s11, 1
      %p28 = por %p26, %p27
      %p29 = scmp.ne.s32.totalorder %s21, %s24
      %p30 = scmp.eq.s32.totalorder %s11, 0
      %p31 = por %p29, %p30
      %p32 = scmp.ne.s32.totalorder %s21, %s24
      %p33 = scmp.eq.s32.totalorder %s16, 1
      %p34 = por %p32, %p33
      %p35 = scmp.ne.s32.totalorder %s24, %s25
      %p36 = scmp.eq.s32.totalorder %s16, 0
      %p37 = por %p35, %p36
      %p38 = scmp.ne.s32.totalorder %s24, %s25
      %p39 = scmp.eq.s32.totalorder %s17, 1
      %p40 = por %p38, %p39
      %p42 = scmp.ne.s32.totalorder %s25, %s41
      %p43 = scmp.eq.s32.totalorder %s17, 0
      %p44 = por %p42, %p43
      %s46 = sadd.s32 %s45, 1
      %p49 = scmp.eq.s32.totalorder %s11, 1
      %p50 = scmp.ne.s32.totalorder %s45, %s47
      %p51 = scmp.eq.s32.totalorder %s11, 0
      %p52 = por %p50, %p51
      %p53 = scmp.ne.s32.totalorder %s45, %s47
      %p54 = scmp.eq.s32.totalorder %s16, 1
      %p55 = por %p53, %p54
      %p56 = scmp.ne.s32.totalorder %s47, %s48
      %p57 = scmp.eq.s32.totalorder %s16, 0
      %p58 = por %p56, %p57
      %p59 = scmp.ne.s32.totalorder %s47, %s48
      %p60 = scmp.eq.s32.totalorder %s17, 1
      %p61 = por %p59, %p60
      %p63 = scmp.ne.s32.totalorder %s48, %s62
      %p64 = scmp.eq.s32.totalorder %s17, 0
      %p65 = por %p63, %p64
      %s66 = ssub.s32 %s11, %s18
      %p67 = scmp.eq.s32.totalorder %s66, 0
      %s69 = sadd.s32 %s68, 1
      %s70 = scalar_select %p67, %s68, %s69
      %p73 = pneg %p67
      %p74 = scmp.eq.s32.totalorder %s11, 1
      %p75 = por %p73, %p74
      %p76 = scmp.ne.s32.totalorder %s68, %s71
      %p77 = scmp.eq.s32.totalorder %s11, 0
      %p78 = por %p76, %p77
      %p79 = scmp.ne.s32.totalorder %s68, %s71
      %p80 = scmp.eq.s32.totalorder %s16, 1
      %p81 = por %p79, %p80
      %p82 = scmp.ne.s32.totalorder %s71, %s72
      %p83 = scmp.eq.s32.totalorder %s16, 0
      %p84 = por %p82, %p83
      %p85 = scmp.ne.s32.totalorder %s71, %s72
      %p86 = scmp.eq.s32.totalorder %s17, 1
      %p87 = por %p85, %p86
      %p89 = scmp.ne.s32.totalorder %s72, %s88
      %p90 = scmp.eq.s32.totalorder %s17, 0
      %p91 = por %p89, %p90
      %p92 = scmp.le.s32.totalorder 1, %s11
      %p93 = scmp.lt.s32.totalorder %s11, 3
      %p94 = pnand %p92, %p93
      %p95 = pneg %p94
      // Predicated region
      $region9: #{tpu_custom_call.1} parent=5 // pred_check
        _
      $region10: #{tpu_custom_call.1} parent=5 // pred_check_branch
        %97 = sbr.rel (%p94) target = $region12
      $region11: #{tpu_custom_call.1} parent=5 // pred_region
        %s98 = ssub.s32 %s11, 1
        // Predicated region
        $region13: #{tpu_custom_call.1} parent=11 // pred_check
          %p99 = pneg %p58
        $region14: #{tpu_custom_call.1} parent=11 // pred_check_branch
          %101 = sbr.rel (%p99) target = $region16
        $region15: #{tpu_custom_call.1} parent=11 // pred_region
          _
        $region16: #{tpu_custom_call.1} parent=11 // pred_fallthru
          _
      $region12: #{tpu_custom_call.1} parent=5 // pred_fallthru
        _
      %p102 = scmp.lt.s32.totalorder %s11, 2
      // Predicated region
      $region17: #{tpu_custom_call.1} parent=5 // pred_check
        %p103 = pneg %p102
      $region18: #{tpu_custom_call.1} parent=5 // pred_check_branch
        %105 = sbr.rel (%p103) target = $region20
      $region19: #{tpu_custom_call.1} parent=5 // pred_region
        // Predicated region
        $region21: #{tpu_custom_call.1} parent=19 // pred_check
          %p106 = pneg %p31
        $region22: #{tpu_custom_call.1} parent=19 // pred_check_branch
          %108 = sbr.rel (%p106) target = $region24
        $region23: #{tpu_custom_call.1} parent=19 // pred_region
          %s109 = smul.u32 16, %s11
          %p110 = scmp.lt.s32.totalorder %s109, 31
          %s111 = scalar_select %p110, %s109, 31
          %s112 = smul.addr %s111, 8
          %s113 = scalar_lea.vmem %s0, %s112
          %s114 = smul.u32 16, %s11
        $region24: #{tpu_custom_call.1} parent=19 // pred_fallthru
          _
      $region20: #{tpu_custom_call.1} parent=5 // pred_fallthru
        _
      %p115 = scmp.le.s32.totalorder 1, %s11
      %p116 = scmp.lt.s32.totalorder %s11, 3
      %p117 = pnand %p115, %p116
      %p118 = pneg %p117
      // Predicated region
      $region25: #{tpu_custom_call.1} parent=5 // pred_check
        _
      $region26: #{tpu_custom_call.1} parent=5 // pred_check_branch
        %120 = sbr.rel (%p117) target = $region28
      $region27: #{tpu_custom_call.1} parent=5 // pred_region
        %s121 = ssub.s32 %s11, 1
        %s122 = smul.u32 16, %s16
        %p123 = scmp.lt.s32.totalorder %s122, 31
        %s124 = scalar_select %p123, %s122, 31
        %s125 = smul.addr %s124, 8
        %s126 = scalar_lea.vmem %s0, %s125
        %p127 = pneg %p37
        %p128 = pneg %p34
        %p129 = pneg %p58
        %p130 = pneg %p55
        %p131 = pneg %p84
        %p132 = pneg %p81
        %s133 = sand.u32 %s71, 1
        %s134 = scalar_lea.sflag [#allocation3], %s133
        %s135 = sand.u32 %s71, 1
        %s136 = smul.addr %s135, 256
        %s137 = scalar_lea.vmem [#allocation2], %s136
        %s138 = smul.u32 16, %s16
        %p139 = scmp.lt.s32.totalorder %s138, 31
        %s140 = scalar_select %p139, %s138, 31
        %s141 = smul.addr %s140, 8
        %s142 = scalar_lea.vmem %s0, %s141
        %s143 = smul.u32 16, %s16
        %s144 = smul.u32 16, %s16
        %v145 = vld [vmem:[%s142] sm:$0xff]
        %v146 = vld [vmem:[%s142 + $0x8] sm:$0xff]
        %v147 = vld [vmem:[%s142 + $0x10] sm:$0xff]
        %v148 = vld [vmem:[%s142 + $0x18] sm:$0xff]
        %v149 = vld [vmem:[%s142 + $0x20] sm:$0xff]
        %v150 = vld [vmem:[%s142 + $0x28] sm:$0xff]
        %v151 = vld [vmem:[%s142 + $0x30] sm:$0xff]
        %v152 = vld [vmem:[%s142 + $0x38] sm:$0xff]
        %v153 = vld [vmem:[%s142 + $0x40] sm:$0xff]
        %v154 = vld [vmem:[%s142 + $0x48] sm:$0xff]
        %v155 = vld [vmem:[%s142 + $0x50] sm:$0xff]
        %v156 = vld [vmem:[%s142 + $0x58] sm:$0xff]
        %v157 = vld [vmem:[%s142 + $0x60] sm:$0xff]
        %v158 = vld [vmem:[%s142 + $0x68] sm:$0xff]
        %v159 = vld [vmem:[%s142 + $0x70] sm:$0xff]
        %v160 = vld [vmem:[%s142 + $0x78] sm:$0xff]
        %v161 = vld [vmem:[%s1] sm:$0xff]
        %v162 = vld [vmem:[%s1 + $0x8] sm:$0xff]
        %v163 = vld [vmem:[%s1 + $0x10] sm:$0xff]
        %v164 = vld [vmem:[%s1 + $0x18] sm:$0xff]
        %v165 = vld [vmem:[%s1 + $0x20] sm:$0xff]
        %v166 = vld [vmem:[%s1 + $0x28] sm:$0xff]
        %v167 = vld [vmem:[%s1 + $0x30] sm:$0xff]
        %v168 = vld [vmem:[%s1 + $0x38] sm:$0xff]
        %vm169 = vcmask 261120
        %v171 = vsel %vm169, %v145, 0
        %v174 = vsel %vm169, %v146, 0
        %v177 = vsel %vm169, %v147, 0
        %v180 = vsel %vm169, %v148, 0
        %v183 = vsel %vm169, %v149, 0
        %v186 = vsel %vm169, %v150, 0
        %v189 = vsel %vm169, %v151, 0
        %v192 = vsel %vm169, %v152, 0
        %v195 = vsel %vm169, %v153, 0
        %v198 = vsel %vm169, %v154, 0
        %v201 = vsel %vm169, %v155, 0
        %v204 = vsel %vm169, %v156, 0
        %v207 = vsel %vm169, %v157, 0
        %v210 = vsel %vm169, %v158, 0
        %v213 = vsel %vm169, %v159, 0
        %v216 = vsel %vm169, %v160, 0
        %218 = vmatprep.subr.mxu0 0.0
        %219 = vmatpush1.msra.mxu0 0.0
        %220 = vmatprep.subr.mxu0 0.0
        %221 = vmatpush1.msra.mxu0 0.0
        %222 = vmatprep.subr.mxu0 0.0
        %223 = vmatpush1.msra.mxu0 0.0
        %224 = vmatprep.subr.mxu0 0.0
        %225 = vmatpush1.msra.mxu0 0.0
        %226 = vmatprep.subr.mxu0 0.0
        %227 = vmatpush1.msra.mxu0 0.0
        %228 = vmatprep.subr.mxu0 0.0
        %229 = vmatpush1.msra.mxu0 0.0
        %230 = vmatprep.subr.mxu0 0.0
        %231 = vmatpush1.msra.mxu0 0.0
        %232 = vmatprep.subr.mxu0 0.0
        %233 = vmatpush1.msra.mxu0 0.0
        %234 = vmatprep.subr.mxu0 0.0
        %235 = vmatpush1.msra.mxu0 0.0
        %236 = vmatprep.subr.mxu0 0.0
        %237 = vmatpush1.msra.mxu0 0.0
        %238 = vmatprep.subr.mxu0 0.0
        %239 = vmatpush1.msra.mxu0 0.0
        %240 = vmatprep.subr.mxu0 0.0
        %241 = vmatpush1.msra.mxu0 0.0
        %242 = vmatprep.subr.mxu0 %v168
        %243 = vmatpush1.msra.mxu0 %v167
        %244 = vmatprep.subr.mxu0 %v166
        %245 = vmatpush1.msra.mxu0 %v165
        %246 = vmatprep.subr.mxu0 %v164
        %247 = vmatpush1.msra.mxu0 %v163
        %248 = vmatprep.subr.mxu0 %v162
        %249 = vmatpush1.msra.mxu0 %v161
        %250 = vmatprep.subr.mxu0 0.0
        %251 = vmatpush2.msra.mxu0 0.0
        %252 = vmatprep.subr.mxu0 0.0
        %253 = vmatpush2.msra.mxu0 0.0
        %254 = vmatprep.subr.mxu0 0.0
        %255 = vmatpush2.msra.mxu0 0.0
        %256 = vmatprep.subr.mxu0 0.0
        %257 = vmatpush2.msra.mxu0 0.0
        %258 = vmatprep.subr.mxu0 0.0
        %259 = vmatpush2.msra.mxu0 0.0
        %260 = vmatprep.subr.mxu0 0.0
        %261 = vmatpush2.msra.mxu0 0.0
        %262 = vmatprep.subr.mxu0 0.0
        %263 = vmatpush2.msra.mxu0 0.0
        %264 = vmatprep.subr.mxu0 0.0
        %265 = vmatpush2.msra.mxu0 0.0
        %266 = vmatprep.subr.mxu0 0.0
        %267 = vmatpush2.msra.mxu0 0.0
        %268 = vmatprep.subr.mxu0 0.0
        %269 = vmatpush2.msra.mxu0 0.0
        %270 = vmatprep.subr.mxu0 0.0
        %271 = vmatpush2.msra.mxu0 0.0
        %272 = vmatprep.subr.mxu0 0.0
        %273 = vmatpush2.msra.mxu0 0.0
        %274 = vmatprep.subr.mxu0 0.0
        %275 = vmatpush2.msra.mxu0 0.0
        %276 = vmatprep.subr.mxu0 0.0
        %277 = vmatpush2.msra.mxu0 0.0
        %278 = vmatprep.subr.mxu0 0.0
        %279 = vmatpush2.msra.mxu0 0.0
        %280 = vmatprep.subr.mxu0 0.0
        %281 = vmatpush2.msra.mxu0 0.0
        %282 = vmatprep.mubr.f32.mxu0 0.0
        %283 = vmatmul.mubr.f32.gmra.mxu0 %v171
        %v284 = vpop.f32.mrf.mxu0
        %v285 = vadd.f32 0.0, %v284
        %v286 = vpop.f32.mrf.mxu0
        %v287 = vadd.f32 0.0, %v286
        %288 = vmatprep.mubr.f32.mxu0 0.0
        %289 = vmatmul.mubr.f32.gmra.mxu0 %v174
        %v290 = vpop.f32.mrf.mxu0
        %v291 = vadd.f32 0.0, %v290
        %v292 = vpop.f32.mrf.mxu0
        %v293 = vadd.f32 0.0, %v292
        %294 = vmatprep.mubr.f32.mxu0 0.0
        %295 = vmatmul.mubr.f32.gmra.mxu0 %v177
        %v296 = vpop.f32.mrf.mxu0
        %v297 = vadd.f32 0.0, %v296
        %v298 = vpop.f32.mrf.mxu0
        %v299 = vadd.f32 0.0, %v298
        %300 = vmatprep.mubr.f32.mxu0 0.0
        %301 = vmatmul.mubr.f32.gmra.mxu0 %v180
        %v302 = vpop.f32.mrf.mxu0
        %v303 = vadd.f32 0.0, %v302
        %v304 = vpop.f32.mrf.mxu0
        %v305 = vadd.f32 0.0, %v304
        %306 = vmatprep.mubr.f32.mxu0 0.0
        %307 = vmatmul.mubr.f32.gmra.mxu0 %v183
        %v308 = vpop.f32.mrf.mxu0
        %v309 = vadd.f32 0.0, %v308
        %v310 = vpop.f32.mrf.mxu0
        %v311 = vadd.f32 0.0, %v310
        %312 = vmatprep.mubr.f32.mxu0 0.0
        %313 = vmatmul.mubr.f32.gmra.mxu0 %v186
        %v314 = vpop.f32.mrf.mxu0
        %v315 = vadd.f32 0.0, %v314
        %v316 = vpop.f32.mrf.mxu0
        %v317 = vadd.f32 0.0, %v316
        %318 = vmatprep.mubr.f32.mxu0 0.0
        %319 = vmatmul.mubr.f32.gmra.mxu0 %v189
        %v320 = vpop.f32.mrf.mxu0
        %v321 = vadd.f32 0.0, %v320
        %v322 = vpop.f32.mrf.mxu0
        %v323 = vadd.f32 0.0, %v322
        %324 = vmatprep.mubr.f32.mxu0 0.0
        %325 = vmatmul.mubr.f32.gmra.mxu0 %v192
        %v326 = vpop.f32.mrf.mxu0
        %v327 = vadd.f32 0.0, %v326
        %v328 = vpop.f32.mrf.mxu0
        %v329 = vadd.f32 0.0, %v328
        %330 = vmatprep.mubr.f32.mxu0 0.0
        %331 = vmatmul.mubr.f32.gmra.mxu0 %v195
        %v332 = vpop.f32.mrf.mxu0
        %v333 = vadd.f32 0.0, %v332
        %v334 = vpop.f32.mrf.mxu0
        %v335 = vadd.f32 0.0, %v334
        %336 = vmatprep.mubr.f32.mxu0 0.0
        %337 = vmatmul.mubr.f32.gmra.mxu0 %v198
        %v338 = vpop.f32.mrf.mxu0
        %v339 = vadd.f32 0.0, %v338
        %v340 = vpop.f32.mrf.mxu0
        %v341 = vadd.f32 0.0, %v340
        %342 = vmatprep.mubr.f32.mxu0 0.0
        %343 = vmatmul.mubr.f32.gmra.mxu0 %v201
        %v344 = vpop.f32.mrf.mxu0
        %v345 = vadd.f32 0.0, %v344
        %v346 = vpop.f32.mrf.mxu0
        %v347 = vadd.f32 0.0, %v346
        %348 = vmatprep.mubr.f32.mxu0 0.0
        %349 = vmatmul.mubr.f32.gmra.mxu0 %v204
        %v350 = vpop.f32.mrf.mxu0
        %v351 = vadd.f32 0.0, %v350
        %v352 = vpop.f32.mrf.mxu0
        %v353 = vadd.f32 0.0, %v352
        %354 = vmatprep.mubr.f32.mxu0 0.0
        %355 = vmatmul.mubr.f32.gmra.mxu0 %v207
        %v356 = vpop.f32.mrf.mxu0
        %v357 = vadd.f32 0.0, %v356
        %v358 = vpop.f32.mrf.mxu0
        %v359 = vadd.f32 0.0, %v358
        %360 = vmatprep.mubr.f32.mxu0 0.0
        %361 = vmatmul.mubr.f32.gmra.mxu0 %v210
        %v362 = vpop.f32.mrf.mxu0
        %v363 = vadd.f32 0.0, %v362
        %v364 = vpop.f32.mrf.mxu0
        %v365 = vadd.f32 0.0, %v364
        %366 = vmatprep.mubr.f32.mxu0 0.0
        %367 = vmatmul.mubr.f32.gmra.mxu0 %v213
        %v368 = vpop.f32.mrf.mxu0
        %v369 = vadd.f32 0.0, %v368
        %v370 = vpop.f32.mrf.mxu0
        %v371 = vadd.f32 0.0, %v370
        %372 = vmatprep.mubr.f32.mxu0 0.0
        %373 = vmatmul.mubr.f32.gmra.mxu0 %v216
        %v374 = vpop.f32.mrf.mxu0
        %v375 = vadd.f32 0.0, %v374
        %v376 = vpop.f32.mrf.mxu0
        %v377 = vadd.f32 0.0, %v376
        %378 = vdwg.mxu0
        %v379 = vmul.f32 %v285, 0.5
        %v380 = vmul.f32 %v287, 0.5
        %v381 = vmul.f32 %v291, 0.5
        %v382 = vmul.f32 %v293, 0.5
        %v383 = vmul.f32 %v297, 0.5
        %v384 = vmul.f32 %v299, 0.5
        %v385 = vmul.f32 %v303, 0.5
        %v386 = vmul.f32 %v305, 0.5
        %v387 = vmul.f32 %v309, 0.5
        %v388 = vmul.f32 %v311, 0.5
        %v389 = vmul.f32 %v315, 0.5
        %v390 = vmul.f32 %v317, 0.5
        %v391 = vmul.f32 %v321, 0.5
        %v392 = vmul.f32 %v323, 0.5
        %v393 = vmul.f32 %v327, 0.5
        %v394 = vmul.f32 %v329, 0.5
        %v395 = vmul.f32 %v333, 0.5
        %v396 = vmul.f32 %v335, 0.5
        %v397 = vmul.f32 %v339, 0.5
        %v398 = vmul.f32 %v341, 0.5
        %v399 = vmul.f32 %v345, 0.5
        %v400 = vmul.f32 %v347, 0.5
        %v401 = vmul.f32 %v351, 0.5
        %v402 = vmul.f32 %v353, 0.5
        %v403 = vmul.f32 %v357, 0.5
        %v404 = vmul.f32 %v359, 0.5
        %v405 = vmul.f32 %v363, 0.5
        %v406 = vmul.f32 %v365, 0.5
        %v407 = vmul.f32 %v369, 0.5
        %v408 = vmul.f32 %v371, 0.5
        %v409 = vmul.f32 %v375, 0.5
        %v410 = vmul.f32 %v377, 0.5
        %v411 = vtanh.pop %v379
        %v412 = vtanh.pop %v380
        %v413 = vtanh.pop %v381
        %v414 = vtanh.pop %v382
        %v415 = vtanh.pop %v383
        %v416 = vtanh.pop %v384
        %v417 = vtanh.pop %v385
        %v418 = vtanh.pop %v386
        %v419 = vtanh.pop %v387
        %v420 = vtanh.pop %v388
        %v421 = vtanh.pop %v389
        %v422 = vtanh.pop %v390
        %v423 = vtanh.pop %v391
        %v424 = vtanh.pop %v392
        %v425 = vtanh.pop %v393
        %v426 = vtanh.pop %v394
        %v427 = vtanh.pop %v395
        %v428 = vtanh.pop %v396
        %v429 = vtanh.pop %v397
        %v430 = vtanh.pop %v398
        %v431 = vtanh.pop %v399
        %v432 = vtanh.pop %v400
        %v433 = vtanh.pop %v401
        %v434 = vtanh.pop %v402
        %v435 = vtanh.pop %v403
        %v436 = vtanh.pop %v404
        %v437 = vtanh.pop %v405
        %v438 = vtanh.pop %v406
        %v439 = vtanh.pop %v407
        %v440 = vtanh.pop %v408
        %v441 = vtanh.pop %v409
        %v442 = vtanh.pop %v410
        %v443 = vmul.f32 %v411, 0.5
        %v444 = vmul.f32 %v412, 0.5
        %v445 = vmul.f32 %v413, 0.5
        %v446 = vmul.f32 %v414, 0.5
        %v447 = vmul.f32 %v415, 0.5
        %v448 = vmul.f32 %v416, 0.5
        %v449 = vmul.f32 %v417, 0.5
        %v450 = vmul.f32 %v418, 0.5
        %v451 = vmul.f32 %v419, 0.5
        %v452 = vmul.f32 %v420, 0.5
        %v453 = vmul.f32 %v421, 0.5
        %v454 = vmul.f32 %v422, 0.5
        %v455 = vmul.f32 %v423, 0.5
        %v456 = vmul.f32 %v424, 0.5
        %v457 = vmul.f32 %v425, 0.5
        %v458 = vmul.f32 %v426, 0.5
        %v459 = vmul.f32 %v427, 0.5
        %v460 = vmul.f32 %v428, 0.5
        %v461 = vmul.f32 %v429, 0.5
        %v462 = vmul.f32 %v430, 0.5
        %v463 = vmul.f32 %v431, 0.5
        %v464 = vmul.f32 %v432, 0.5
        %v465 = vmul.f32 %v433, 0.5
        %v466 = vmul.f32 %v434, 0.5
        %v467 = vmul.f32 %v435, 0.5
        %v468 = vmul.f32 %v436, 0.5
        %v469 = vmul.f32 %v437, 0.5
        %v470 = vmul.f32 %v438, 0.5
        %v471 = vmul.f32 %v439, 0.5
        %v472 = vmul.f32 %v440, 0.5
        %v473 = vmul.f32 %v441, 0.5
        %v474 = vmul.f32 %v442, 0.5
        %v475 = vadd.f32 %v443, 0.5
        %v476 = vadd.f32 %v444, 0.5
        %v477 = vadd.f32 %v445, 0.5
        %v478 = vadd.f32 %v446, 0.5
        %v479 = vadd.f32 %v447, 0.5
        %v480 = vadd.f32 %v448, 0.5
        %v481 = vadd.f32 %v449, 0.5
        %v482 = vadd.f32 %v450, 0.5
        %v483 = vadd.f32 %v451, 0.5
        %v484 = vadd.f32 %v452, 0.5
        %v485 = vadd.f32 %v453, 0.5
        %v486 = vadd.f32 %v454, 0.5
        %v487 = vadd.f32 %v455, 0.5
        %v488 = vadd.f32 %v456, 0.5
        %v489 = vadd.f32 %v457, 0.5
        %v490 = vadd.f32 %v458, 0.5
        %v491 = vadd.f32 %v459, 0.5
        %v492 = vadd.f32 %v460, 0.5
        %v493 = vadd.f32 %v461, 0.5
        %v494 = vadd.f32 %v462, 0.5
        %v495 = vadd.f32 %v463, 0.5
        %v496 = vadd.f32 %v464, 0.5
        %v497 = vadd.f32 %v465, 0.5
        %v498 = vadd.f32 %v466, 0.5
        %v499 = vadd.f32 %v467, 0.5
        %v500 = vadd.f32 %v468, 0.5
        %v501 = vadd.f32 %v469, 0.5
        %v502 = vadd.f32 %v470, 0.5
        %v503 = vadd.f32 %v471, 0.5
        %v504 = vadd.f32 %v472, 0.5
        %v505 = vadd.f32 %v473, 0.5
        %v506 = vadd.f32 %v474, 0.5
        %507 = vst [vmem:[%s137] sm:$0xff] %v475
        %508 = vst [vmem:[%s137 + $0x8] sm:$0xff] %v476
        %509 = vst [vmem:[%s137 + $0x10] sm:$0xff] %v477
        %510 = vst [vmem:[%s137 + $0x18] sm:$0xff] %v478
        %511 = vst [vmem:[%s137 + $0x20] sm:$0xff] %v479
        %512 = vst [vmem:[%s137 + $0x28] sm:$0xff] %v480
        %513 = vst [vmem:[%s137 + $0x30] sm:$0xff] %v481
        %514 = vst [vmem:[%s137 + $0x38] sm:$0xff] %v482
        %515 = vst [vmem:[%s137 + $0x40] sm:$0xff] %v483
        %516 = vst [vmem:[%s137 + $0x48] sm:$0xff] %v484
        %517 = vst [vmem:[%s137 + $0x50] sm:$0xff] %v485
        %518 = vst [vmem:[%s137 + $0x58] sm:$0xff] %v486
        %519 = vst [vmem:[%s137 + $0x60] sm:$0xff] %v487
        %520 = vst [vmem:[%s137 + $0x68] sm:$0xff] %v488
        %521 = vst [vmem:[%s137 + $0x70] sm:$0xff] %v489
        %522 = vst [vmem:[%s137 + $0x78] sm:$0xff] %v490
        %523 = vst [vmem:[%s137 + $0x80] sm:$0xff] %v491
        %524 = vst [vmem:[%s137 + $0x88] sm:$0xff] %v492
        %525 = vst [vmem:[%s137 + $0x90] sm:$0xff] %v493
        %526 = vst [vmem:[%s137 + $0x98] sm:$0xff] %v494
        %527 = vst [vmem:[%s137 + $0xa0] sm:$0xff] %v495
        %528 = vst [vmem:[%s137 + $0xa8] sm:$0xff] %v496
        %529 = vst [vmem:[%s137 + $0xb0] sm:$0xff] %v497
        %530 = vst [vmem:[%s137 + $0xb8] sm:$0xff] %v498
        %531 = vst [vmem:[%s137 + $0xc0] sm:$0xff] %v499
        %532 = vst [vmem:[%s137 + $0xc8] sm:$0xff] %v500
        %533 = vst [vmem:[%s137 + $0xd0] sm:$0xff] %v501
        %534 = vst [vmem:[%s137 + $0xd8] sm:$0xff] %v502
        %535 = vst [vmem:[%s137 + $0xe0] sm:$0xff] %v503
        %536 = vst [vmem:[%s137 + $0xe8] sm:$0xff] %v504
        %537 = vst [vmem:[%s137 + $0xf0] sm:$0xff] %v505
        %538 = vst [vmem:[%s137 + $0xf8] sm:$0xff] %v506
        %s539 = sand.u32 %s71, 1
        %s540 = scalar_lea.sflag [#allocation3], %s539
        %s541 = sand.u32 %s71, 1
        %s542 = smul.addr %s541, 256
        %s543 = scalar_lea.vmem [#allocation2], %s542
        // Predicated region
        $region29: #{tpu_custom_call.1} parent=27 // pred_check
          %p544 = pneg %p81
        $region30: #{tpu_custom_call.1} parent=27 // pred_check_branch
          %546 = sbr.rel (%p544) target = $region32
        $region31: #{tpu_custom_call.1} parent=27 // pred_region
          %s547 = smul.u32 16, %s16
          %s549 = ssub.s32 4096, 4096
          %550 = vsyncadd %s540, %s549
          %s551 = smul.addr %s547, 2
          %s552 = smul.addr %s551, 128
          %s553 = scalar_lea.hbm %s2, %s552
          %s554 = sshll.u32 %s543, 4
          %s555 = int_to_ptr.vmem [resolvable:$true] %s554
          %560 = dma.vmem_to_hbm [thread:$0]  %s555, 4096, %s553, %s540, 256, 256, 16
        $region32: #{tpu_custom_call.1} parent=27 // pred_fallthru
          _
      $region28: #{tpu_custom_call.1} parent=5 // pred_fallthru
        _
      %p561 = scmp.le.s32.totalorder 2, %s11
      // Predicated region
      $region33: #{tpu_custom_call.1} parent=5 // pred_check
        %p562 = pneg %p561
      $region34: #{tpu_custom_call.1} parent=5 // pred_check_branch
        %564 = sbr.rel (%p562) target = $region36
      $region35: #{tpu_custom_call.1} parent=5 // pred_region
        %s565 = ssub.s32 %s11, 2
        // Predicated region
        $region37: #{tpu_custom_call.1} parent=35 // pred_check
          %p566 = pneg %p87
        $region38: #{tpu_custom_call.1} parent=35 // pred_check_branch
          %568 = sbr.rel (%p566) target = $region40
        $region39: #{tpu_custom_call.1} parent=35 // pred_region
          %s569 = sand.u32 %s72, 1
          %s570 = scalar_lea.sflag [#allocation3], %s569
          %s571 = sand.u32 %s72, 1
          %s572 = smul.addr %s571, 256
          %s573 = scalar_lea.vmem [#allocation2], %s572
          %574 = dma.done %s570, 4096
        $region40: #{tpu_custom_call.1} parent=35 // pred_fallthru
          _
      $region36: #{tpu_custom_call.1} parent=5 // pred_fallthru
        _
    $region6: #{tpu_custom_call.1} parent=1 // loop_footer
      %s15 = sadd.s32 1, %s11
    $region7: #{tpu_custom_call.1} parent=1 // loop_footer_branch
      %10 = sbr.rel target = $region3
    $region8: #{tpu_custom_call.1} parent=1 // loop_exit
      _
    %575 = vsyncpa [#allocation3], 1
    %s576 = scalar_lea.sflag [#allocation3], 1
    %577 = vsyncpa %s576, 1

// kernel: tpu_custom_call.1
$region0: #{tpu_custom_call.1}
  #allocation0 [shape = 'u32[]', space=smem, size = 0x4, offset = 0x4, fixed_abs, tag = 'smem constant byte address 0x4 - core index']
  #allocation1 [shape = 'u32[144,128]{1,0:T(1,128)}', space=vmem, size = 0x12000, scoped, tag = 'internal scratch']
  %s0 = inlined_call_operand.vmem [shape: f32[256,32], index: 0, kind: input, shape index: {}]
  %s1 = inlined_call_operand.vmem [shape: f32[32,256], index: 1, kind: input, shape index: {}]
  %s2 = inlined_call_operand.hbm [shape: f32[256,256], index: 2, kind: output, shape index: {}]
  %s3 = sld [smem:[#allocation0]]
  $region41: #{tpu_custom_call.1} parent=0
    _
  %s5 = ssub.s32 1, %s3
  %s6 = scalar_select 0, %s5, %s3
  $region1: #{tpu_custom_call.1} parent=0
    #allocation2 [shape = 'u8[262144]{0}', space=vmem, size = 0x40000, scoped, tag = 'output window, operand 0']
    #allocation3 [shape = 's32[2]{0}', space=sflag, size = 0x8, scoped, tag = 'scoped memory for tpu_custom_call.1']
    %7 = vsyncpa [#allocation3], 0
    %s8 = scalar_lea.sflag [#allocation3], 1
    %9 = vsyncpa %s8, 0
    loop: start=0, step=1, limit=4
    $region2: #{tpu_custom_call.1} parent=1 // loop_pre_header
      _
    $region3: #{tpu_custom_call.1} parent=1 // loop_header
      %s11 = sphi 0, %s15
      %p12 = scmp.ge.s32.totalorder %s11, 4
      %s21 = sphi 0, %s23
      %s24 = sphi 0, %s21
      %s25 = sphi 0, %s24
      %s41 = sphi 0, %s25
      %s45 = sphi 0, %s45
      %s47 = sphi 0, %s45
      %s48 = sphi 0, %s47
      %s62 = sphi 0, %s48
      %s68 = sphi 0, %s70
      %s71 = sphi 0, %s68
      %s72 = sphi 0, %s71
      %s88 = sphi 0, %s72
    $region4: #{tpu_custom_call.1} parent=1 // loop_header_branch
      %14 = sbr.rel (%p12) target = $region8
    $region5: #{tpu_custom_call.1} parent=1 // loop_body
      %s16 = ssub.s32 %s11, 1
      %s17 = ssub.s32 %s11, 2
      %s18 = sadd.s32 %s11, 1
      %s19 = ssub.s32 %s11, %s18
      %p20 = scmp.eq.s32.totalorder %s19, 0
      %s22 = sadd.s32 %s21, 1
      %s23 = scalar_select %p20, %s21, %s22
      %p26 = pneg %p20
      %p27 = scmp.eq.s32.totalorder %s11, 1
      %p28 = por %p26, %p27
      %p29 = scmp.ne.s32.totalorder %s21, %s24
      %p30 = scmp.eq.s32.totalorder %s11, 0
      %p31 = por %p29, %p30
      %p32 = scmp.ne.s32.totalorder %s21, %s24
      %p33 = scmp.eq.s32.totalorder %s16, 1
      %p34 = por %p32, %p33
      %p35 = scmp.ne.s32.totalorder %s24, %s25
      %p36 = scmp.eq.s32.totalorder %s16, 0
      %p37 = por %p35, %p36
      %p38 = scmp.ne.s32.totalorder %s24, %s25
      %p39 = scmp.eq.s32.totalorder %s17, 1
      %p40 = por %p38, %p39
      %p42 = scmp.ne.s32.totalorder %s25, %s41
      %p43 = scmp.eq.s32.totalorder %s17, 0
      %p44 = por %p42, %p43
      %s46 = sadd.s32 %s45, 1
      %p49 = scmp.eq.s32.totalorder %s11, 1
      %p50 = scmp.ne.s32.totalorder %s45, %s47
      %p51 = scmp.eq.s32.totalorder %s11, 0
      %p52 = por %p50, %p51
      %p53 = scmp.ne.s32.totalorder %s45, %s47
      %p54 = scmp.eq.s32.totalorder %s16, 1
      %p55 = por %p53, %p54
      %p56 = scmp.ne.s32.totalorder %s47, %s48
      %p57 = scmp.eq.s32.totalorder %s16, 0
      %p58 = por %p56, %p57
      %p59 = scmp.ne.s32.totalorder %s47, %s48
      %p60 = scmp.eq.s32.totalorder %s17, 1
      %p61 = por %p59, %p60
      %p63 = scmp.ne.s32.totalorder %s48, %s62
      %p64 = scmp.eq.s32.totalorder %s17, 0
      %p65 = por %p63, %p64
      %s66 = ssub.s32 %s11, %s18
      %p67 = scmp.eq.s32.totalorder %s66, 0
      %s69 = sadd.s32 %s68, 1
      %s70 = scalar_select %p67, %s68, %s69
      %p73 = pneg %p67
      %p74 = scmp.eq.s32.totalorder %s11, 1
      %p75 = por %p73, %p74
      %p76 = scmp.ne.s32.totalorder %s68, %s71
      %p77 = scmp.eq.s32.totalorder %s11, 0
      %p78 = por %p76, %p77
      %p79 = scmp.ne.s32.totalorder %s68, %s71
      %p80 = scmp.eq.s32.totalorder %s16, 1
      %p81 = por %p79, %p80
      %p82 = scmp.ne.s32.totalorder %s71, %s72
      %p83 = scmp.eq.s32.totalorder %s16, 0
      %p84 = por %p82, %p83
      %p85 = scmp.ne.s32.totalorder %s71, %s72
      %p86 = scmp.eq.s32.totalorder %s17, 1
      %p87 = por %p85, %p86
      %p89 = scmp.ne.s32.totalorder %s72, %s88
      %p90 = scmp.eq.s32.totalorder %s17, 0
      %p91 = por %p89, %p90
      %p92 = scmp.le.s32.totalorder 1, %s11
      %p93 = scmp.lt.s32.totalorder %s11, 3
      %p94 = pnand %p92, %p93
      %p95 = pneg %p94
      // Predicated region
      $region9: #{tpu_custom_call.1} parent=5 // pred_check
        _
      $region10: #{tpu_custom_call.1} parent=5 // pred_check_branch
        %97 = sbr.rel (%p94) target = $region12
      $region11: #{tpu_custom_call.1} parent=5 // pred_region
        %s98 = ssub.s32 %s11, 1
        // Predicated region
        $region13: #{tpu_custom_call.1} parent=11 // pred_check
          %p99 = pneg %p58
        $region14: #{tpu_custom_call.1} parent=11 // pred_check_branch
          %101 = sbr.rel (%p99) target = $region16
        $region15: #{tpu_custom_call.1} parent=11 // pred_region
          _
        $region16: #{tpu_custom_call.1} parent=11 // pred_fallthru
          _
      $region12: #{tpu_custom_call.1} parent=5 // pred_fallthru
        _
      %p102 = scmp.lt.s32.totalorder %s11, 2
      // Predicated region
      $region17: #{tpu_custom_call.1} parent=5 // pred_check
        %p103 = pneg %p102
      $region18: #{tpu_custom_call.1} parent=5 // pred_check_branch
        %105 = sbr.rel (%p103) target = $region20
      $region19: #{tpu_custom_call.1} parent=5 // pred_region
        // Predicated region
        $region21: #{tpu_custom_call.1} parent=19 // pred_check
          %p106 = pneg %p31
        $region22: #{tpu_custom_call.1} parent=19 // pred_check_branch
          %108 = sbr.rel (%p106) target = $region24
        $region23: #{tpu_custom_call.1} parent=19 // pred_region
          %s109 = smul.u32 16, %s11
          %p110 = scmp.lt.s32.totalorder %s109, 31
          %s111 = scalar_select %p110, %s109, 31
          %s112 = smul.addr %s111, 8
          %s113 = scalar_lea.vmem %s0, %s112
          %s114 = smul.u32 16, %s11
        $region24: #{tpu_custom_call.1} parent=19 // pred_fallthru
          _
      $region20: #{tpu_custom_call.1} parent=5 // pred_fallthru
        _
      %p115 = scmp.le.s32.totalorder 1, %s11
      %p116 = scmp.lt.s32.totalorder %s11, 3
      %p117 = pnand %p115, %p116
      %p118 = pneg %p117
      // Predicated region
      $region25: #{tpu_custom_call.1} parent=5 // pred_check
        _
      $region26: #{tpu_custom_call.1} parent=5 // pred_check_branch
        %120 = sbr.rel (%p117) target = $region28
      $region27: #{tpu_custom_call.1} parent=5 // pred_region
        %s121 = ssub.s32 %s11, 1
        %s122 = smul.u32 16, %s16
        %p123 = scmp.lt.s32.totalorder %s122, 31
        %s124 = scalar_select %p123, %s122, 31
        %s125 = smul.addr %s124, 8
        %s126 = scalar_lea.vmem %s0, %s125
        %p127 = pneg %p37
        %p128 = pneg %p34
        %p129 = pneg %p58
        %p130 = pneg %p55
        %p131 = pneg %p84
        %p132 = pneg %p81
        %s133 = sand.u32 %s71, 1
        %s134 = scalar_lea.sflag [#allocation3], %s133
        %s135 = sand.u32 %s71, 1
        %s136 = smul.addr %s135, 256
        %s137 = scalar_lea.vmem [#allocation2], %s136
        %s138 = smul.u32 16, %s16
        %p139 = scmp.lt.s32.totalorder %s138, 31
        %s140 = scalar_select %p139, %s138, 31
        %s141 = smul.addr %s140, 8
        %s142 = scalar_lea.vmem %s0, %s141
        %s143 = smul.u32 16, %s16
        %s144 = smul.u32 16, %s16
        %v145 = vld [vmem:[%s142] sm:$0xff]
        %v146 = vld [vmem:[%s142 + $0x8] sm:$0xff]
        %v147 = vld [vmem:[%s142 + $0x10] sm:$0xff]
        %v148 = vld [vmem:[%s142 + $0x18] sm:$0xff]
        %v149 = vld [vmem:[%s142 + $0x20] sm:$0xff]
        %v150 = vld [vmem:[%s142 + $0x28] sm:$0xff]
        %v151 = vld [vmem:[%s142 + $0x30] sm:$0xff]
        %v152 = vld [vmem:[%s142 + $0x38] sm:$0xff]
        %v153 = vld [vmem:[%s142 + $0x40] sm:$0xff]
        %v154 = vld [vmem:[%s142 + $0x48] sm:$0xff]
        %v155 = vld [vmem:[%s142 + $0x50] sm:$0xff]
        %v156 = vld [vmem:[%s142 + $0x58] sm:$0xff]
        %v157 = vld [vmem:[%s142 + $0x60] sm:$0xff]
        %v158 = vld [vmem:[%s142 + $0x68] sm:$0xff]
        %v159 = vld [vmem:[%s142 + $0x70] sm:$0xff]
        %v160 = vld [vmem:[%s142 + $0x78] sm:$0xff]
        %v161 = vld [vmem:[%s1] sm:$0xff]
        %v162 = vld [vmem:[%s1 + $0x8] sm:$0xff]
        %v163 = vld [vmem:[%s1 + $0x10] sm:$0xff]
        %v164 = vld [vmem:[%s1 + $0x18] sm:$0xff]
        %v165 = vld [vmem:[%s1 + $0x20] sm:$0xff]
        %v166 = vld [vmem:[%s1 + $0x28] sm:$0xff]
        %v167 = vld [vmem:[%s1 + $0x30] sm:$0xff]
        %v168 = vld [vmem:[%s1 + $0x38] sm:$0xff]
        %vm169 = vcmask 261120
        %v171 = vsel %vm169, %v145, 0
        %v174 = vsel %vm169, %v146, 0
        %v177 = vsel %vm169, %v147, 0
        %v180 = vsel %vm169, %v148, 0
        %v183 = vsel %vm169, %v149, 0
        %v186 = vsel %vm169, %v150, 0
        %v189 = vsel %vm169, %v151, 0
        %v192 = vsel %vm169, %v152, 0
        %v195 = vsel %vm169, %v153, 0
        %v198 = vsel %vm169, %v154, 0
        %v201 = vsel %vm169, %v155, 0
        %v204 = vsel %vm169, %v156, 0
        %v207 = vsel %vm169, %v157, 0
        %v210 = vsel %vm169, %v158, 0
        %v213 = vsel %vm169, %v159, 0
        %v216 = vsel %vm169, %v160, 0
        %218 = vmatprep.subr.mxu0 0.0
        %219 = vmatpush1.msra.mxu0 0.0
        %220 = vmatprep.subr.mxu0 0.0
        %221 = vmatpush1.msra.mxu0 0.0
        %222 = vmatprep.subr.mxu0 0.0
        %223 = vmatpush1.msra.mxu0 0.0
        %224 = vmatprep.subr.mxu0 0.0
        %225 = vmatpush1.msra.mxu0 0.0
        %226 = vmatprep.subr.mxu0 0.0
        %227 = vmatpush1.msra.mxu0 0.0
        %228 = vmatprep.subr.mxu0 0.0
        %229 = vmatpush1.msra.mxu0 0.0
        %230 = vmatprep.subr.mxu0 0.0
        %231 = vmatpush1.msra.mxu0 0.0
        %232 = vmatprep.subr.mxu0 0.0
        %233 = vmatpush1.msra.mxu0 0.0
        %234 = vmatprep.subr.mxu0 0.0
        %235 = vmatpush1.msra.mxu0 0.0
        %236 = vmatprep.subr.mxu0 0.0
        %237 = vmatpush1.msra.mxu0 0.0
        %238 = vmatprep.subr.mxu0 0.0
        %239 = vmatpush1.msra.mxu0 0.0
        %240 = vmatprep.subr.mxu0 0.0
        %241 = vmatpush1.msra.mxu0 0.0
        %242 = vmatprep.subr.mxu0 %v168
        %243 = vmatpush1.msra.mxu0 %v167
        %244 = vmatprep.subr.mxu0 %v166
        %245 = vmatpush1.msra.mxu0 %v165
        %246 = vmatprep.subr.mxu0 %v164
        %247 = vmatpush1.msra.mxu0 %v163
        %248 = vmatprep.subr.mxu0 %v162
        %249 = vmatpush1.msra.mxu0 %v161
        %250 = vmatprep.subr.mxu0 0.0
        %251 = vmatpush2.msra.mxu0 0.0
        %252 = vmatprep.subr.mxu0 0.0
        %253 = vmatpush2.msra.mxu0 0.0
        %254 = vmatprep.subr.mxu0 0.0
        %255 = vmatpush2.msra.mxu0 0.0
        %256 = vmatprep.subr.mxu0 0.0
        %257 = vmatpush2.msra.mxu0 0.0
        %258 = vmatprep.subr.mxu0 0.0
        %259 = vmatpush2.msra.mxu0 0.0
        %260 = vmatprep.subr.mxu0 0.0
        %261 = vmatpush2.msra.mxu0 0.0
        %262 = vmatprep.subr.mxu0 0.0
        %263 = vmatpush2.msra.mxu0 0.0
        %264 = vmatprep.subr.mxu0 0.0
        %265 = vmatpush2.msra.mxu0 0.0
        %266 = vmatprep.subr.mxu0 0.0
        %267 = vmatpush2.msra.mxu0 0.0
        %268 = vmatprep.subr.mxu0 0.0
        %269 = vmatpush2.msra.mxu0 0.0
        %270 = vmatprep.subr.mxu0 0.0
        %271 = vmatpush2.msra.mxu0 0.0
        %272 = vmatprep.subr.mxu0 0.0
        %273 = vmatpush2.msra.mxu0 0.0
        %274 = vmatprep.subr.mxu0 0.0
        %275 = vmatpush2.msra.mxu0 0.0
        %276 = vmatprep.subr.mxu0 0.0
        %277 = vmatpush2.msra.mxu0 0.0
        %278 = vmatprep.subr.mxu0 0.0
        %279 = vmatpush2.msra.mxu0 0.0
        %280 = vmatprep.subr.mxu0 0.0
        %281 = vmatpush2.msra.mxu0 0.0
        %282 = vmatprep.mubr.f32.mxu0 0.0
        %283 = vmatmul.mubr.f32.gmra.mxu0 %v171
        %v284 = vpop.f32.mrf.mxu0
        %v285 = vadd.f32 0.0, %v284
        %v286 = vpop.f32.mrf.mxu0
        %v287 = vadd.f32 0.0, %v286
        %288 = vmatprep.mubr.f32.mxu0 0.0
        %289 = vmatmul.mubr.f32.gmra.mxu0 %v174
        %v290 = vpop.f32.mrf.mxu0
        %v291 = vadd.f32 0.0, %v290
        %v292 = vpop.f32.mrf.mxu0
        %v293 = vadd.f32 0.0, %v292
        %294 = vmatprep.mubr.f32.mxu0 0.0
        %295 = vmatmul.mubr.f32.gmra.mxu0 %v177
        %v296 = vpop.f32.mrf.mxu0
        %v297 = vadd.f32 0.0, %v296
        %v298 = vpop.f32.mrf.mxu0
        %v299 = vadd.f32 0.0, %v298
        %300 = vmatprep.mubr.f32.mxu0 0.0
        %301 = vmatmul.mubr.f32.gmra.mxu0 %v180
        %v302 = vpop.f32.mrf.mxu0
        %v303 = vadd.f32 0.0, %v302
        %v304 = vpop.f32.mrf.mxu0
        %v305 = vadd.f32 0.0, %v304
        %306 = vmatprep.mubr.f32.mxu0 0.0
        %307 = vmatmul.mubr.f32.gmra.mxu0 %v183
        %v308 = vpop.f32.mrf.mxu0
        %v309 = vadd.f32 0.0, %v308
        %v310 = vpop.f32.mrf.mxu0
        %v311 = vadd.f32 0.0, %v310
        %312 = vmatprep.mubr.f32.mxu0 0.0
        %313 = vmatmul.mubr.f32.gmra.mxu0 %v186
        %v314 = vpop.f32.mrf.mxu0
        %v315 = vadd.f32 0.0, %v314
        %v316 = vpop.f32.mrf.mxu0
        %v317 = vadd.f32 0.0, %v316
        %318 = vmatprep.mubr.f32.mxu0 0.0
        %319 = vmatmul.mubr.f32.gmra.mxu0 %v189
        %v320 = vpop.f32.mrf.mxu0
        %v321 = vadd.f32 0.0, %v320
        %v322 = vpop.f32.mrf.mxu0
        %v323 = vadd.f32 0.0, %v322
        %324 = vmatprep.mubr.f32.mxu0 0.0
        %325 = vmatmul.mubr.f32.gmra.mxu0 %v192
        %v326 = vpop.f32.mrf.mxu0
        %v327 = vadd.f32 0.0, %v326
        %v328 = vpop.f32.mrf.mxu0
        %v329 = vadd.f32 0.0, %v328
        %330 = vmatprep.mubr.f32.mxu0 0.0
        %331 = vmatmul.mubr.f32.gmra.mxu0 %v195
        %v332 = vpop.f32.mrf.mxu0
        %v333 = vadd.f32 0.0, %v332
        %v334 = vpop.f32.mrf.mxu0
        %v335 = vadd.f32 0.0, %v334
        %336 = vmatprep.mubr.f32.mxu0 0.0
        %337 = vmatmul.mubr.f32.gmra.mxu0 %v198
        %v338 = vpop.f32.mrf.mxu0
        %v339 = vadd.f32 0.0, %v338
        %v340 = vpop.f32.mrf.mxu0
        %v341 = vadd.f32 0.0, %v340
        %342 = vmatprep.mubr.f32.mxu0 0.0
        %343 = vmatmul.mubr.f32.gmra.mxu0 %v201
        %v344 = vpop.f32.mrf.mxu0
        %v345 = vadd.f32 0.0, %v344
        %v346 = vpop.f32.mrf.mxu0
        %v347 = vadd.f32 0.0, %v346
        %348 = vmatprep.mubr.f32.mxu0 0.0
        %349 = vmatmul.mubr.f32.gmra.mxu0 %v204
        %v350 = vpop.f32.mrf.mxu0
        %v351 = vadd.f32 0.0, %v350
        %v352 = vpop.f32.mrf.mxu0
        %v353 = vadd.f32 0.0, %v352
        %354 = vmatprep.mubr.f32.mxu0 0.0
        %355 = vmatmul.mubr.f32.gmra.mxu0 %v207
        %v356 = vpop.f32.mrf.mxu0
        %v357 = vadd.f32 0.0, %v356
        %v358 = vpop.f32.mrf.mxu0
        %v359 = vadd.f32 0.0, %v358
        %360 = vmatprep.mubr.f32.mxu0 0.0
        %361 = vmatmul.mubr.f32.gmra.mxu0 %v210
        %v362 = vpop.f32.mrf.mxu0
        %v363 = vadd.f32 0.0, %v362
        %v364 = vpop.f32.mrf.mxu0
        %v365 = vadd.f32 0.0, %v364
        %366 = vmatprep.mubr.f32.mxu0 0.0
        %367 = vmatmul.mubr.f32.gmra.mxu0 %v213
        %v368 = vpop.f32.mrf.mxu0
        %v369 = vadd.f32 0.0, %v368
        %v370 = vpop.f32.mrf.mxu0
        %v371 = vadd.f32 0.0, %v370
        %372 = vmatprep.mubr.f32.mxu0 0.0
        %373 = vmatmul.mubr.f32.gmra.mxu0 %v216
        %v374 = vpop.f32.mrf.mxu0
        %v375 = vadd.f32 0.0, %v374
        %v376 = vpop.f32.mrf.mxu0
        %v377 = vadd.f32 0.0, %v376
        %378 = vdwg.mxu0
        %v379 = vmul.f32 %v285, 0.5
        %v380 = vmul.f32 %v287, 0.5
        %v381 = vmul.f32 %v291, 0.5
        %v382 = vmul.f32 %v293, 0.5
        %v383 = vmul.f32 %v297, 0.5
        %v384 = vmul.f32 %v299, 0.5
        %v385 = vmul.f32 %v303, 0.5
        %v386 = vmul.f32 %v305, 0.5
        %v387 = vmul.f32 %v309, 0.5
        %v388 = vmul.f32 %v311, 0.5
        %v389 = vmul.f32 %v315, 0.5
        %v390 = vmul.f32 %v317, 0.5
        %v391 = vmul.f32 %v321, 0.5
        %v392 = vmul.f32 %v323, 0.5
        %v393 = vmul.f32 %v327, 0.5
        %v394 = vmul.f32 %v329, 0.5
        %v395 = vmul.f32 %v333, 0.5
        %v396 = vmul.f32 %v335, 0.5
        %v397 = vmul.f32 %v339, 0.5
        %v398 = vmul.f32 %v341, 0.5
        %v399 = vmul.f32 %v345, 0.5
        %v400 = vmul.f32 %v347, 0.5
        %v401 = vmul.f32 %v351, 0.5
        %v402 = vmul.f32 %v353, 0.5
        %v403 = vmul.f32 %v357, 0.5
        %v404 = vmul.f32 %v359, 0.5
        %v405 = vmul.f32 %v363, 0.5
        %v406 = vmul.f32 %v365, 0.5
        %v407 = vmul.f32 %v369, 0.5
        %v408 = vmul.f32 %v371, 0.5
        %v409 = vmul.f32 %v375, 0.5
        %v410 = vmul.f32 %v377, 0.5
        %v411 = vtanh.pop %v379
        %v412 = vtanh.pop %v380
        %v413 = vtanh.pop %v381
        %v414 = vtanh.pop %v382
        %v415 = vtanh.pop %v383
        %v416 = vtanh.pop %v384
        %v417 = vtanh.pop %v385
        %v418 = vtanh.pop %v386
        %v419 = vtanh.pop %v387
        %v420 = vtanh.pop %v388
        %v421 = vtanh.pop %v389
        %v422 = vtanh.pop %v390
        %v423 = vtanh.pop %v391
        %v424 = vtanh.pop %v392
        %v425 = vtanh.pop %v393
        %v426 = vtanh.pop %v394
        %v427 = vtanh.pop %v395
        %v428 = vtanh.pop %v396
        %v429 = vtanh.pop %v397
        %v430 = vtanh.pop %v398
        %v431 = vtanh.pop %v399
        %v432 = vtanh.pop %v400
        %v433 = vtanh.pop %v401
        %v434 = vtanh.pop %v402
        %v435 = vtanh.pop %v403
        %v436 = vtanh.pop %v404
        %v437 = vtanh.pop %v405
        %v438 = vtanh.pop %v406
        %v439 = vtanh.pop %v407
        %v440 = vtanh.pop %v408
        %v441 = vtanh.pop %v409
        %v442 = vtanh.pop %v410
        %v443 = vmul.f32 %v411, 0.5
        %v444 = vmul.f32 %v412, 0.5
        %v445 = vmul.f32 %v413, 0.5
        %v446 = vmul.f32 %v414, 0.5
        %v447 = vmul.f32 %v415, 0.5
        %v448 = vmul.f32 %v416, 0.5
        %v449 = vmul.f32 %v417, 0.5
        %v450 = vmul.f32 %v418, 0.5
        %v451 = vmul.f32 %v419, 0.5
        %v452 = vmul.f32 %v420, 0.5
        %v453 = vmul.f32 %v421, 0.5
        %v454 = vmul.f32 %v422, 0.5
        %v455 = vmul.f32 %v423, 0.5
        %v456 = vmul.f32 %v424, 0.5
        %v457 = vmul.f32 %v425, 0.5
        %v458 = vmul.f32 %v426, 0.5
        %v459 = vmul.f32 %v427, 0.5
        %v460 = vmul.f32 %v428, 0.5
        %v461 = vmul.f32 %v429, 0.5
        %v462 = vmul.f32 %v430, 0.5
        %v463 = vmul.f32 %v431, 0.5
        %v464 = vmul.f32 %v432, 0.5
        %v465 = vmul.f32 %v433, 0.5
        %v466 = vmul.f32 %v434, 0.5
        %v467 = vmul.f32 %v435, 0.5
        %v468 = vmul.f32 %v436, 0.5
        %v469 = vmul.f32 %v437, 0.5
        %v470 = vmul.f32 %v438, 0.5
        %v471 = vmul.f32 %v439, 0.5
        %v472 = vmul.f32 %v440, 0.5
        %v473 = vmul.f32 %v441, 0.5
        %v474 = vmul.f32 %v442, 0.5
        %v475 = vadd.f32 %v443, 0.5
        %v476 = vadd.f32 %v444, 0.5
        %v477 = vadd.f32 %v445, 0.5
        %v478 = vadd.f32 %v446, 0.5
        %v479 = vadd.f32 %v447, 0.5
        %v480 = vadd.f32 %v448, 0.5
        %v481 = vadd.f32 %v449, 0.5
        %v482 = vadd.f32 %v450, 0.5
        %v483 = vadd.f32 %v451, 0.5
        %v484 = vadd.f32 %v452, 0.5
        %v485 = vadd.f32 %v453, 0.5
        %v486 = vadd.f32 %v454, 0.5
        %v487 = vadd.f32 %v455, 0.5
        %v488 = vadd.f32 %v456, 0.5
        %v489 = vadd.f32 %v457, 0.5
        %v490 = vadd.f32 %v458, 0.5
        %v491 = vadd.f32 %v459, 0.5
        %v492 = vadd.f32 %v460, 0.5
        %v493 = vadd.f32 %v461, 0.5
        %v494 = vadd.f32 %v462, 0.5
        %v495 = vadd.f32 %v463, 0.5
        %v496 = vadd.f32 %v464, 0.5
        %v497 = vadd.f32 %v465, 0.5
        %v498 = vadd.f32 %v466, 0.5
        %v499 = vadd.f32 %v467, 0.5
        %v500 = vadd.f32 %v468, 0.5
        %v501 = vadd.f32 %v469, 0.5
        %v502 = vadd.f32 %v470, 0.5
        %v503 = vadd.f32 %v471, 0.5
        %v504 = vadd.f32 %v472, 0.5
        %v505 = vadd.f32 %v473, 0.5
        %v506 = vadd.f32 %v474, 0.5
        %507 = vst [vmem:[%s137] sm:$0xff] %v475
        %508 = vst [vmem:[%s137 + $0x8] sm:$0xff] %v476
        %509 = vst [vmem:[%s137 + $0x10] sm:$0xff] %v477
        %510 = vst [vmem:[%s137 + $0x18] sm:$0xff] %v478
        %511 = vst [vmem:[%s137 + $0x20] sm:$0xff] %v479
        %512 = vst [vmem:[%s137 + $0x28] sm:$0xff] %v480
        %513 = vst [vmem:[%s137 + $0x30] sm:$0xff] %v481
        %514 = vst [vmem:[%s137 + $0x38] sm:$0xff] %v482
        %515 = vst [vmem:[%s137 + $0x40] sm:$0xff] %v483
        %516 = vst [vmem:[%s137 + $0x48] sm:$0xff] %v484
        %517 = vst [vmem:[%s137 + $0x50] sm:$0xff] %v485
        %518 = vst [vmem:[%s137 + $0x58] sm:$0xff] %v486
        %519 = vst [vmem:[%s137 + $0x60] sm:$0xff] %v487
        %520 = vst [vmem:[%s137 + $0x68] sm:$0xff] %v488
        %521 = vst [vmem:[%s137 + $0x70] sm:$0xff] %v489
        %522 = vst [vmem:[%s137 + $0x78] sm:$0xff] %v490
        %523 = vst [vmem:[%s137 + $0x80] sm:$0xff] %v491
        %524 = vst [vmem:[%s137 + $0x88] sm:$0xff] %v492
        %525 = vst [vmem:[%s137 + $0x90] sm:$0xff] %v493
        %526 = vst [vmem:[%s137 + $0x98] sm:$0xff] %v494
        %527 = vst [vmem:[%s137 + $0xa0] sm:$0xff] %v495
        %528 = vst [vmem:[%s137 + $0xa8] sm:$0xff] %v496
        %529 = vst [vmem:[%s137 + $0xb0] sm:$0xff] %v497
        %530 = vst [vmem:[%s137 + $0xb8] sm:$0xff] %v498
        %531 = vst [vmem:[%s137 + $0xc0] sm:$0xff] %v499
        %532 = vst [vmem:[%s137 + $0xc8] sm:$0xff] %v500
        %533 = vst [vmem:[%s137 + $0xd0] sm:$0xff] %v501
        %534 = vst [vmem:[%s137 + $0xd8] sm:$0xff] %v502
        %535 = vst [vmem:[%s137 + $0xe0] sm:$0xff] %v503
        %536 = vst [vmem:[%s137 + $0xe8] sm:$0xff] %v504
        %537 = vst [vmem:[%s137 + $0xf0] sm:$0xff] %v505
        %538 = vst [vmem:[%s137 + $0xf8] sm:$0xff] %v506
        %s539 = sand.u32 %s71, 1
        %s540 = scalar_lea.sflag [#allocation3], %s539
        %s541 = sand.u32 %s71, 1
        %s542 = smul.addr %s541, 256
        %s543 = scalar_lea.vmem [#allocation2], %s542
        // Predicated region
        $region29: #{tpu_custom_call.1} parent=27 // pred_check
          %p544 = pneg %p81
        $region30: #{tpu_custom_call.1} parent=27 // pred_check_branch
          %546 = sbr.rel (%p544) target = $region32
        $region31: #{tpu_custom_call.1} parent=27 // pred_region
          %s547 = smul.u32 16, %s16
          %s549 = ssub.s32 4096, 4096
          %550 = vsyncadd %s540, %s549
          %s551 = smul.addr %s547, 2
          %s552 = smul.addr %s551, 128
          %s553 = scalar_lea.hbm %s2, %s552
          %s554 = sshll.u32 %s543, 4
          %s555 = int_to_ptr.vmem [resolvable:$true] %s554
          %560 = dma.vmem_to_hbm [thread:$0]  %s555, 4096, %s553, %s540, 256, 256, 16
        $region32: #{tpu_custom_call.1} parent=27 // pred_fallthru
          _
      $region28: #{tpu_custom_call.1} parent=5 // pred_fallthru
        _
      %p561 = scmp.le.s32.totalorder 2, %s11
      // Predicated region
      $region33: #{tpu_custom_call.1} parent=5 // pred_check
        %p562 = pneg %p561
      $region34: #{tpu_custom_call.1} parent=5 // pred_check_branch
        %564 = sbr.rel (%p562) target = $region36
      $region35: #{tpu_custom_call.1} parent=5 // pred_region
        %s565 = ssub.s32 %s11, 2
        // Predicated region
        $region37: #{tpu_custom_call.1} parent=35 // pred_check
          %p566 = pneg %p87
        $region38: #{tpu_custom_call.1} parent=35 // pred_check_branch
          %568 = sbr.rel (%p566) target = $region40
        $region39: #{tpu_custom_call.1} parent=35 // pred_region
          %s569 = sand.u32 %s72, 1
          %s570 = scalar_lea.sflag [#allocation3], %s569
          %s571 = sand.u32 %s72, 1
          %s572 = smul.addr %s571, 256
          %s573 = scalar_lea.vmem [#allocation2], %s572
          %574 = dma.done %s570, 4096
        $region40: #{tpu_custom_call.1} parent=35 // pred_fallthru
          _
      $region36: #{tpu_custom_call.1} parent=5 // pred_fallthru
        _
    $region6: #{tpu_custom_call.1} parent=1 // loop_footer
      %s15 = sadd.s32 1, %s11
    $region7: #{tpu_custom_call.1} parent=1 // loop_footer_branch
      %10 = sbr.rel target = $region3
    $region8: #{tpu_custom_call.1} parent=1 // loop_exit
      _
    %575 = vsyncpa [#allocation3], 1
    %s576 = scalar_lea.sflag [#allocation3], 1
    %577 = vsyncpa %s576, 1

// kernel: tpu_custom_call.1
$region0: #{tpu_custom_call.1}
  #allocation0 [shape = 'u32[]', space=smem, size = 0x4, offset = 0x4, fixed_abs, tag = 'smem constant byte address 0x4 - core index']
  #allocation1 [shape = 'u32[144,128]{1,0:T(1,128)}', space=vmem, size = 0x12000, scoped, tag = 'internal scratch']
  %s0 = inlined_call_operand.vmem [shape: f32[256,32], index: 0, kind: input, shape index: {}]
  %s1 = inlined_call_operand.vmem [shape: f32[32,256], index: 1, kind: input, shape index: {}]
  %s2 = inlined_call_operand.hbm [shape: f32[256,256], index: 2, kind: output, shape index: {}]
  %s3 = sld [smem:[#allocation0]]
  $region18: #{tpu_custom_call.1} parent=0
    _
  %s5 = ssub.s32 1, %s3
  %s6 = scalar_select 0, %s5, %s3
  $region1: #{tpu_custom_call.1} parent=0
    #allocation2 [shape = 'u8[262144]{0}', space=vmem, size = 0x40000, scoped, tag = 'output window, operand 0, single buffered']
    #allocation3 [shape = 's32[1]{0}', space=sflag, size = 0x4, scoped, tag = 'scoped memory for tpu_custom_call.1']
    %7 = vsyncpa [#allocation3], 0
    // Predicated region
    $region2: #{tpu_custom_call.1} parent=1 // pred_check
      _
    $region3: #{tpu_custom_call.1} parent=1 // pred_check_branch
      %9 = sbr.rel (0) target = $region5
    $region4: #{tpu_custom_call.1} parent=1 // pred_region
      _
    $region5: #{tpu_custom_call.1} parent=1 // pred_fallthru
      _
    // Predicated region
    $region6: #{tpu_custom_call.1} parent=1 // pred_check
      _
    $region7: #{tpu_custom_call.1} parent=1 // pred_check_branch
      %11 = sbr.rel (0) target = $region9
    $region8: #{tpu_custom_call.1} parent=1 // pred_region
      _
    $region9: #{tpu_custom_call.1} parent=1 // pred_fallthru
      _
    %v12 = vld [vmem:[%s0] sm:$0xff]
    %v13 = vld [vmem:[%s0 + $0x8] sm:$0xff]
    %v14 = vld [vmem:[%s0 + $0x10] sm:$0xff]
    %v15 = vld [vmem:[%s0 + $0x18] sm:$0xff]
    %v16 = vld [vmem:[%s0 + $0x20] sm:$0xff]
    %v17 = vld [vmem:[%s0 + $0x28] sm:$0xff]
    %v18 = vld [vmem:[%s0 + $0x30] sm:$0xff]
    %v19 = vld [vmem:[%s0 + $0x38] sm:$0xff]
    %v20 = vld [vmem:[%s0 + $0x40] sm:$0xff]
    %v21 = vld [vmem:[%s0 + $0x48] sm:$0xff]
    %v22 = vld [vmem:[%s0 + $0x50] sm:$0xff]
    %v23 = vld [vmem:[%s0 + $0x58] sm:$0xff]
    %v24 = vld [vmem:[%s0 + $0x60] sm:$0xff]
    %v25 = vld [vmem:[%s0 + $0x68] sm:$0xff]
    %v26 = vld [vmem:[%s0 + $0x70] sm:$0xff]
    %v27 = vld [vmem:[%s0 + $0x78] sm:$0xff]
    %v28 = vld [vmem:[%s0 + $0x80] sm:$0xff]
    %v29 = vld [vmem:[%s0 + $0x88] sm:$0xff]
    %v30 = vld [vmem:[%s0 + $0x90] sm:$0xff]
    %v31 = vld [vmem:[%s0 + $0x98] sm:$0xff]
    %v32 = vld [vmem:[%s0 + $0xa0] sm:$0xff]
    %v33 = vld [vmem:[%s0 + $0xa8] sm:$0xff]
    %v34 = vld [vmem:[%s0 + $0xb0] sm:$0xff]
    %v35 = vld [vmem:[%s0 + $0xb8] sm:$0xff]
    %v36 = vld [vmem:[%s0 + $0xc0] sm:$0xff]
    %v37 = vld [vmem:[%s0 + $0xc8] sm:$0xff]
    %v38 = vld [vmem:[%s0 + $0xd0] sm:$0xff]
    %v39 = vld [vmem:[%s0 + $0xd8] sm:$0xff]
    %v40 = vld [vmem:[%s0 + $0xe0] sm:$0xff]
    %v41 = vld [vmem:[%s0 + $0xe8] sm:$0xff]
    %v42 = vld [vmem:[%s0 + $0xf0] sm:$0xff]
    %v43 = vld [vmem:[%s0 + $0xf8] sm:$0xff]
    %v44 = vld [vmem:[%s1] sm:$0xff]
    %v45 = vld [vmem:[%s1 + $0x8] sm:$0xff]
    %v46 = vld [vmem:[%s1 + $0x10] sm:$0xff]
    %v47 = vld [vmem:[%s1 + $0x18] sm:$0xff]
    %v48 = vld [vmem:[%s1 + $0x20] sm:$0xff]
    %v49 = vld [vmem:[%s1 + $0x28] sm:$0xff]
    %v50 = vld [vmem:[%s1 + $0x30] sm:$0xff]
    %v51 = vld [vmem:[%s1 + $0x38] sm:$0xff]
    %vm52 = vcmask 261120
    %v54 = vsel %vm52, %v12, 0
    %v57 = vsel %vm52, %v13, 0
    %v60 = vsel %vm52, %v14, 0
    %v63 = vsel %vm52, %v15, 0
    %v66 = vsel %vm52, %v16, 0
    %v69 = vsel %vm52, %v17, 0
    %v72 = vsel %vm52, %v18, 0
    %v75 = vsel %vm52, %v19, 0
    %v78 = vsel %vm52, %v20, 0
    %v81 = vsel %vm52, %v21, 0
    %v84 = vsel %vm52, %v22, 0
    %v87 = vsel %vm52, %v23, 0
    %v90 = vsel %vm52, %v24, 0
    %v93 = vsel %vm52, %v25, 0
    %v96 = vsel %vm52, %v26, 0
    %v99 = vsel %vm52, %v27, 0
    %v102 = vsel %vm52, %v28, 0
    %v105 = vsel %vm52, %v29, 0
    %v108 = vsel %vm52, %v30, 0
    %v111 = vsel %vm52, %v31, 0
    %v114 = vsel %vm52, %v32, 0
    %v117 = vsel %vm52, %v33, 0
    %v120 = vsel %vm52, %v34, 0
    %v123 = vsel %vm52, %v35, 0
    %v126 = vsel %vm52, %v36, 0
    %v129 = vsel %vm52, %v37, 0
    %v132 = vsel %vm52, %v38, 0
    %v135 = vsel %vm52, %v39, 0
    %v138 = vsel %vm52, %v40, 0
    %v141 = vsel %vm52, %v41, 0
    %v144 = vsel %vm52, %v42, 0
    %v147 = vsel %vm52, %v43, 0
    %149 = vmatprep.subr.mxu0 0.0
    %150 = vmatpush1.msra.mxu0 0.0
    %151 = vmatprep.subr.mxu0 0.0
    %152 = vmatpush1.msra.mxu0 0.0
    %153 = vmatprep.subr.mxu0 0.0
    %154 = vmatpush1.msra.mxu0 0.0
    %155 = vmatprep.subr.mxu0 0.0
    %156 = vmatpush1.msra.mxu0 0.0
    %157 = vmatprep.subr.mxu0 0.0
    %158 = vmatpush1.msra.mxu0 0.0
    %159 = vmatprep.subr.mxu0 0.0
    %160 = vmatpush1.msra.mxu0 0.0
    %161 = vmatprep.subr.mxu0 0.0
    %162 = vmatpush1.msra.mxu0 0.0
    %163 = vmatprep.subr.mxu0 0.0
    %164 = vmatpush1.msra.mxu0 0.0
    %165 = vmatprep.subr.mxu0 0.0
    %166 = vmatpush1.msra.mxu0 0.0
    %167 = vmatprep.subr.mxu0 0.0
    %168 = vmatpush1.msra.mxu0 0.0
    %169 = vmatprep.subr.mxu0 0.0
    %170 = vmatpush1.msra.mxu0 0.0
    %171 = vmatprep.subr.mxu0 0.0
    %172 = vmatpush1.msra.mxu0 0.0
    %173 = vmatprep.subr.mxu0 %v51
    %174 = vmatpush1.msra.mxu0 %v50
    %175 = vmatprep.subr.mxu0 %v49
    %176 = vmatpush1.msra.mxu0 %v48
    %177 = vmatprep.subr.mxu0 %v47
    %178 = vmatpush1.msra.mxu0 %v46
    %179 = vmatprep.subr.mxu0 %v45
    %180 = vmatpush1.msra.mxu0 %v44
    %181 = vmatprep.subr.mxu0 0.0
    %182 = vmatpush2.msra.mxu0 0.0
    %183 = vmatprep.subr.mxu0 0.0
    %184 = vmatpush2.msra.mxu0 0.0
    %185 = vmatprep.subr.mxu0 0.0
    %186 = vmatpush2.msra.mxu0 0.0
    %187 = vmatprep.subr.mxu0 0.0
    %188 = vmatpush2.msra.mxu0 0.0
    %189 = vmatprep.subr.mxu0 0.0
    %190 = vmatpush2.msra.mxu0 0.0
    %191 = vmatprep.subr.mxu0 0.0
    %192 = vmatpush2.msra.mxu0 0.0
    %193 = vmatprep.subr.mxu0 0.0
    %194 = vmatpush2.msra.mxu0 0.0
    %195 = vmatprep.subr.mxu0 0.0
    %196 = vmatpush2.msra.mxu0 0.0
    %197 = vmatprep.subr.mxu0 0.0
    %198 = vmatpush2.msra.mxu0 0.0
    %199 = vmatprep.subr.mxu0 0.0
    %200 = vmatpush2.msra.mxu0 0.0
    %201 = vmatprep.subr.mxu0 0.0
    %202 = vmatpush2.msra.mxu0 0.0
    %203 = vmatprep.subr.mxu0 0.0
    %204 = vmatpush2.msra.mxu0 0.0
    %205 = vmatprep.subr.mxu0 0.0
    %206 = vmatpush2.msra.mxu0 0.0
    %207 = vmatprep.subr.mxu0 0.0
    %208 = vmatpush2.msra.mxu0 0.0
    %209 = vmatprep.subr.mxu0 0.0
    %210 = vmatpush2.msra.mxu0 0.0
    %211 = vmatprep.subr.mxu0 0.0
    %212 = vmatpush2.msra.mxu0 0.0
    %213 = vmatprep.mubr.f32.mxu0 0.0
    %214 = vmatmul.mubr.f32.gmra.mxu0 %v54
    %v215 = vpop.f32.mrf.mxu0
    %v216 = vadd.f32 0.0, %v215
    %v217 = vpop.f32.mrf.mxu0
    %v218 = vadd.f32 0.0, %v217
    %219 = vmatprep.mubr.f32.mxu0 0.0
    %220 = vmatmul.mubr.f32.gmra.mxu0 %v57
    %v221 = vpop.f32.mrf.mxu0
    %v222 = vadd.f32 0.0, %v221
    %v223 = vpop.f32.mrf.mxu0
    %v224 = vadd.f32 0.0, %v223
    %225 = vmatprep.mubr.f32.mxu0 0.0
    %226 = vmatmul.mubr.f32.gmra.mxu0 %v60
    %v227 = vpop.f32.mrf.mxu0
    %v228 = vadd.f32 0.0, %v227
    %v229 = vpop.f32.mrf.mxu0
    %v230 = vadd.f32 0.0, %v229
    %231 = vmatprep.mubr.f32.mxu0 0.0
    %232 = vmatmul.mubr.f32.gmra.mxu0 %v63
    %v233 = vpop.f32.mrf.mxu0
    %v234 = vadd.f32 0.0, %v233
    %v235 = vpop.f32.mrf.mxu0
    %v236 = vadd.f32 0.0, %v235
    %237 = vmatprep.mubr.f32.mxu0 0.0
    %238 = vmatmul.mubr.f32.gmra.mxu0 %v66
    %v239 = vpop.f32.mrf.mxu0
    %v240 = vadd.f32 0.0, %v239
    %v241 = vpop.f32.mrf.mxu0
    %v242 = vadd.f32 0.0, %v241
    %243 = vmatprep.mubr.f32.mxu0 0.0
    %244 = vmatmul.mubr.f32.gmra.mxu0 %v69
    %v245 = vpop.f32.mrf.mxu0
    %v246 = vadd.f32 0.0, %v245
    %v247 = vpop.f32.mrf.mxu0
    %v248 = vadd.f32 0.0, %v247
    %249 = vmatprep.mubr.f32.mxu0 0.0
    %250 = vmatmul.mubr.f32.gmra.mxu0 %v72
    %v251 = vpop.f32.mrf.mxu0
    %v252 = vadd.f32 0.0, %v251
    %v253 = vpop.f32.mrf.mxu0
    %v254 = vadd.f32 0.0, %v253
    %255 = vmatprep.mubr.f32.mxu0 0.0
    %256 = vmatmul.mubr.f32.gmra.mxu0 %v75
    %v257 = vpop.f32.mrf.mxu0
    %v258 = vadd.f32 0.0, %v257
    %v259 = vpop.f32.mrf.mxu0
    %v260 = vadd.f32 0.0, %v259
    %261 = vmatprep.mubr.f32.mxu0 0.0
    %262 = vmatmul.mubr.f32.gmra.mxu0 %v78
    %v263 = vpop.f32.mrf.mxu0
    %v264 = vadd.f32 0.0, %v263
    %v265 = vpop.f32.mrf.mxu0
    %v266 = vadd.f32 0.0, %v265
    %267 = vmatprep.mubr.f32.mxu0 0.0
    %268 = vmatmul.mubr.f32.gmra.mxu0 %v81
    %v269 = vpop.f32.mrf.mxu0
    %v270 = vadd.f32 0.0, %v269
    %v271 = vpop.f32.mrf.mxu0
    %v272 = vadd.f32 0.0, %v271
    %273 = vmatprep.mubr.f32.mxu0 0.0
    %274 = vmatmul.mubr.f32.gmra.mxu0 %v84
    %v275 = vpop.f32.mrf.mxu0
    %v276 = vadd.f32 0.0, %v275
    %v277 = vpop.f32.mrf.mxu0
    %v278 = vadd.f32 0.0, %v277
    %279 = vmatprep.mubr.f32.mxu0 0.0
    %280 = vmatmul.mubr.f32.gmra.mxu0 %v87
    %v281 = vpop.f32.mrf.mxu0
    %v282 = vadd.f32 0.0, %v281
    %v283 = vpop.f32.mrf.mxu0
    %v284 = vadd.f32 0.0, %v283
    %285 = vmatprep.mubr.f32.mxu0 0.0
    %286 = vmatmul.mubr.f32.gmra.mxu0 %v90
    %v287 = vpop.f32.mrf.mxu0
    %v288 = vadd.f32 0.0, %v287
    %v289 = vpop.f32.mrf.mxu0
    %v290 = vadd.f32 0.0, %v289
    %291 = vmatprep.mubr.f32.mxu0 0.0
    %292 = vmatmul.mubr.f32.gmra.mxu0 %v93
    %v293 = vpop.f32.mrf.mxu0
    %v294 = vadd.f32 0.0, %v293
    %v295 = vpop.f32.mrf.mxu0
    %v296 = vadd.f32 0.0, %v295
    %297 = vmatprep.mubr.f32.mxu0 0.0
    %298 = vmatmul.mubr.f32.gmra.mxu0 %v96
    %v299 = vpop.f32.mrf.mxu0
    %v300 = vadd.f32 0.0, %v299
    %v301 = vpop.f32.mrf.mxu0
    %v302 = vadd.f32 0.0, %v301
    %303 = vmatprep.mubr.f32.mxu0 0.0
    %304 = vmatmul.mubr.f32.gmra.mxu0 %v99
    %v305 = vpop.f32.mrf.mxu0
    %v306 = vadd.f32 0.0, %v305
    %v307 = vpop.f32.mrf.mxu0
    %v308 = vadd.f32 0.0, %v307
    %309 = vmatprep.mubr.f32.mxu0 0.0
    %310 = vmatmul.mubr.f32.gmra.mxu0 %v102
    %v311 = vpop.f32.mrf.mxu0
    %v312 = vadd.f32 0.0, %v311
    %v313 = vpop.f32.mrf.mxu0
    %v314 = vadd.f32 0.0, %v313
    %315 = vmatprep.mubr.f32.mxu0 0.0
    %316 = vmatmul.mubr.f32.gmra.mxu0 %v105
    %v317 = vpop.f32.mrf.mxu0
    %v318 = vadd.f32 0.0, %v317
    %v319 = vpop.f32.mrf.mxu0
    %v320 = vadd.f32 0.0, %v319
    %321 = vmatprep.mubr.f32.mxu0 0.0
    %322 = vmatmul.mubr.f32.gmra.mxu0 %v108
    %v323 = vpop.f32.mrf.mxu0
    %v324 = vadd.f32 0.0, %v323
    %v325 = vpop.f32.mrf.mxu0
    %v326 = vadd.f32 0.0, %v325
    %327 = vmatprep.mubr.f32.mxu0 0.0
    %328 = vmatmul.mubr.f32.gmra.mxu0 %v111
    %v329 = vpop.f32.mrf.mxu0
    %v330 = vadd.f32 0.0, %v329
    %v331 = vpop.f32.mrf.mxu0
    %v332 = vadd.f32 0.0, %v331
    %333 = vmatprep.mubr.f32.mxu0 0.0
    %334 = vmatmul.mubr.f32.gmra.mxu0 %v114
    %v335 = vpop.f32.mrf.mxu0
    %v336 = vadd.f32 0.0, %v335
    %v337 = vpop.f32.mrf.mxu0
    %v338 = vadd.f32 0.0, %v337
    %339 = vmatprep.mubr.f32.mxu0 0.0
    %340 = vmatmul.mubr.f32.gmra.mxu0 %v117
    %v341 = vpop.f32.mrf.mxu0
    %v342 = vadd.f32 0.0, %v341
    %v343 = vpop.f32.mrf.mxu0
    %v344 = vadd.f32 0.0, %v343
    %345 = vmatprep.mubr.f32.mxu0 0.0
    %346 = vmatmul.mubr.f32.gmra.mxu0 %v120
    %v347 = vpop.f32.mrf.mxu0
    %v348 = vadd.f32 0.0, %v347
    %v349 = vpop.f32.mrf.mxu0
    %v350 = vadd.f32 0.0, %v349
    %351 = vmatprep.mubr.f32.mxu0 0.0
    %352 = vmatmul.mubr.f32.gmra.mxu0 %v123
    %v353 = vpop.f32.mrf.mxu0
    %v354 = vadd.f32 0.0, %v353
    %v355 = vpop.f32.mrf.mxu0
    %v356 = vadd.f32 0.0, %v355
    %357 = vmatprep.mubr.f32.mxu0 0.0
    %358 = vmatmul.mubr.f32.gmra.mxu0 %v126
    %v359 = vpop.f32.mrf.mxu0
    %v360 = vadd.f32 0.0, %v359
    %v361 = vpop.f32.mrf.mxu0
    %v362 = vadd.f32 0.0, %v361
    %363 = vmatprep.mubr.f32.mxu0 0.0
    %364 = vmatmul.mubr.f32.gmra.mxu0 %v129
    %v365 = vpop.f32.mrf.mxu0
    %v366 = vadd.f32 0.0, %v365
    %v367 = vpop.f32.mrf.mxu0
    %v368 = vadd.f32 0.0, %v367
    %369 = vmatprep.mubr.f32.mxu0 0.0
    %370 = vmatmul.mubr.f32.gmra.mxu0 %v132
    %v371 = vpop.f32.mrf.mxu0
    %v372 = vadd.f32 0.0, %v371
    %v373 = vpop.f32.mrf.mxu0
    %v374 = vadd.f32 0.0, %v373
    %375 = vmatprep.mubr.f32.mxu0 0.0
    %376 = vmatmul.mubr.f32.gmra.mxu0 %v135
    %v377 = vpop.f32.mrf.mxu0
    %v378 = vadd.f32 0.0, %v377
    %v379 = vpop.f32.mrf.mxu0
    %v380 = vadd.f32 0.0, %v379
    %381 = vmatprep.mubr.f32.mxu0 0.0
    %382 = vmatmul.mubr.f32.gmra.mxu0 %v138
    %v383 = vpop.f32.mrf.mxu0
    %v384 = vadd.f32 0.0, %v383
    %v385 = vpop.f32.mrf.mxu0
    %v386 = vadd.f32 0.0, %v385
    %387 = vmatprep.mubr.f32.mxu0 0.0
    %388 = vmatmul.mubr.f32.gmra.mxu0 %v141
    %v389 = vpop.f32.mrf.mxu0
    %v390 = vadd.f32 0.0, %v389
    %v391 = vpop.f32.mrf.mxu0
    %v392 = vadd.f32 0.0, %v391
    %393 = vmatprep.mubr.f32.mxu0 0.0
    %394 = vmatmul.mubr.f32.gmra.mxu0 %v144
    %v395 = vpop.f32.mrf.mxu0
    %v396 = vadd.f32 0.0, %v395
    %v397 = vpop.f32.mrf.mxu0
    %v398 = vadd.f32 0.0, %v397
    %399 = vmatprep.mubr.f32.mxu0 0.0
    %400 = vmatmul.mubr.f32.gmra.mxu0 %v147
    %v401 = vpop.f32.mrf.mxu0
    %v402 = vadd.f32 0.0, %v401
    %v403 = vpop.f32.mrf.mxu0
    %v404 = vadd.f32 0.0, %v403
    %405 = vdwg.mxu0
    %v406 = vmul.f32 %v216, 0.5
    %v407 = vmul.f32 %v218, 0.5
    %v408 = vmul.f32 %v222, 0.5
    %v409 = vmul.f32 %v224, 0.5
    %v410 = vmul.f32 %v228, 0.5
    %v411 = vmul.f32 %v230, 0.5
    %v412 = vmul.f32 %v234, 0.5
    %v413 = vmul.f32 %v236, 0.5
    %v414 = vmul.f32 %v240, 0.5
    %v415 = vmul.f32 %v242, 0.5
    %v416 = vmul.f32 %v246, 0.5
    %v417 = vmul.f32 %v248, 0.5
    %v418 = vmul.f32 %v252, 0.5
    %v419 = vmul.f32 %v254, 0.5
    %v420 = vmul.f32 %v258, 0.5
    %v421 = vmul.f32 %v260, 0.5
    %v422 = vmul.f32 %v264, 0.5
    %v423 = vmul.f32 %v266, 0.5
    %v424 = vmul.f32 %v270, 0.5
    %v425 = vmul.f32 %v272, 0.5
    %v426 = vmul.f32 %v276, 0.5
    %v427 = vmul.f32 %v278, 0.5
    %v428 = vmul.f32 %v282, 0.5
    %v429 = vmul.f32 %v284, 0.5
    %v430 = vmul.f32 %v288, 0.5
    %v431 = vmul.f32 %v290, 0.5
    %v432 = vmul.f32 %v294, 0.5
    %v433 = vmul.f32 %v296, 0.5
    %v434 = vmul.f32 %v300, 0.5
    %v435 = vmul.f32 %v302, 0.5
    %v436 = vmul.f32 %v306, 0.5
    %v437 = vmul.f32 %v308, 0.5
    %v438 = vmul.f32 %v312, 0.5
    %v439 = vmul.f32 %v314, 0.5
    %v440 = vmul.f32 %v318, 0.5
    %v441 = vmul.f32 %v320, 0.5
    %v442 = vmul.f32 %v324, 0.5
    %v443 = vmul.f32 %v326, 0.5
    %v444 = vmul.f32 %v330, 0.5
    %v445 = vmul.f32 %v332, 0.5
    %v446 = vmul.f32 %v336, 0.5
    %v447 = vmul.f32 %v338, 0.5
    %v448 = vmul.f32 %v342, 0.5
    %v449 = vmul.f32 %v344, 0.5
    %v450 = vmul.f32 %v348, 0.5
    %v451 = vmul.f32 %v350, 0.5
    %v452 = vmul.f32 %v354, 0.5
    %v453 = vmul.f32 %v356, 0.5
    %v454 = vmul.f32 %v360, 0.5
    %v455 = vmul.f32 %v362, 0.5
    %v456 = vmul.f32 %v366, 0.5
    %v457 = vmul.f32 %v368, 0.5
    %v458 = vmul.f32 %v372, 0.5
    %v459 = vmul.f32 %v374, 0.5
    %v460 = vmul.f32 %v378, 0.5
    %v461 = vmul.f32 %v380, 0.5
    %v462 = vmul.f32 %v384, 0.5
    %v463 = vmul.f32 %v386, 0.5
    %v464 = vmul.f32 %v390, 0.5
    %v465 = vmul.f32 %v392, 0.5
    %v466 = vmul.f32 %v396, 0.5
    %v467 = vmul.f32 %v398, 0.5
    %v468 = vmul.f32 %v402, 0.5
    %v469 = vmul.f32 %v404, 0.5
    %v470 = vtanh.pop %v406
    %v471 = vtanh.pop %v407
    %v472 = vtanh.pop %v408
    %v473 = vtanh.pop %v409
    %v474 = vtanh.pop %v410
    %v475 = vtanh.pop %v411
    %v476 = vtanh.pop %v412
    %v477 = vtanh.pop %v413
    %v478 = vtanh.pop %v414
    %v479 = vtanh.pop %v415
    %v480 = vtanh.pop %v416
    %v481 = vtanh.pop %v417
    %v482 = vtanh.pop %v418
    %v483 = vtanh.pop %v419
    %v484 = vtanh.pop %v420
    %v485 = vtanh.pop %v421
    %v486 = vtanh.pop %v422
    %v487 = vtanh.pop %v423
    %v488 = vtanh.pop %v424
    %v489 = vtanh.pop %v425
    %v490 = vtanh.pop %v426
    %v491 = vtanh.pop %v427
    %v492 = vtanh.pop %v428
    %v493 = vtanh.pop %v429
    %v494 = vtanh.pop %v430
    %v495 = vtanh.pop %v431
    %v496 = vtanh.pop %v432
    %v497 = vtanh.pop %v433
    %v498 = vtanh.pop %v434
    %v499 = vtanh.pop %v435
    %v500 = vtanh.pop %v436
    %v501 = vtanh.pop %v437
    %v502 = vtanh.pop %v438
    %v503 = vtanh.pop %v439
    %v504 = vtanh.pop %v440
    %v505 = vtanh.pop %v441
    %v506 = vtanh.pop %v442
    %v507 = vtanh.pop %v443
    %v508 = vtanh.pop %v444
    %v509 = vtanh.pop %v445
    %v510 = vtanh.pop %v446
    %v511 = vtanh.pop %v447
    %v512 = vtanh.pop %v448
    %v513 = vtanh.pop %v449
    %v514 = vtanh.pop %v450
    %v515 = vtanh.pop %v451
    %v516 = vtanh.pop %v452
    %v517 = vtanh.pop %v453
    %v518 = vtanh.pop %v454
    %v519 = vtanh.pop %v455
    %v520 = vtanh.pop %v456
    %v521 = vtanh.pop %v457
    %v522 = vtanh.pop %v458
    %v523 = vtanh.pop %v459
    %v524 = vtanh.pop %v460
    %v525 = vtanh.pop %v461
    %v526 = vtanh.pop %v462
    %v527 = vtanh.pop %v463
    %v528 = vtanh.pop %v464
    %v529 = vtanh.pop %v465
    %v530 = vtanh.pop %v466
    %v531 = vtanh.pop %v467
    %v532 = vtanh.pop %v468
    %v533 = vtanh.pop %v469
    %v534 = vmul.f32 %v470, 0.5
    %v535 = vmul.f32 %v471, 0.5
    %v536 = vmul.f32 %v472, 0.5
    %v537 = vmul.f32 %v473, 0.5
    %v538 = vmul.f32 %v474, 0.5
    %v539 = vmul.f32 %v475, 0.5
    %v540 = vmul.f32 %v476, 0.5
    %v541 = vmul.f32 %v477, 0.5
    %v542 = vmul.f32 %v478, 0.5
    %v543 = vmul.f32 %v479, 0.5
    %v544 = vmul.f32 %v480, 0.5
    %v545 = vmul.f32 %v481, 0.5
    %v546 = vmul.f32 %v482, 0.5
    %v547 = vmul.f32 %v483, 0.5
    %v548 = vmul.f32 %v484, 0.5
    %v549 = vmul.f32 %v485, 0.5
    %v550 = vmul.f32 %v486, 0.5
    %v551 = vmul.f32 %v487, 0.5
    %v552 = vmul.f32 %v488, 0.5
    %v553 = vmul.f32 %v489, 0.5
    %v554 = vmul.f32 %v490, 0.5
    %v555 = vmul.f32 %v491, 0.5
    %v556 = vmul.f32 %v492, 0.5
    %v557 = vmul.f32 %v493, 0.5
    %v558 = vmul.f32 %v494, 0.5
    %v559 = vmul.f32 %v495, 0.5
    %v560 = vmul.f32 %v496, 0.5
    %v561 = vmul.f32 %v497, 0.5
    %v562 = vmul.f32 %v498, 0.5
    %v563 = vmul.f32 %v499, 0.5
    %v564 = vmul.f32 %v500, 0.5
    %v565 = vmul.f32 %v501, 0.5
    %v566 = vmul.f32 %v502, 0.5
    %v567 = vmul.f32 %v503, 0.5
    %v568 = vmul.f32 %v504, 0.5
    %v569 = vmul.f32 %v505, 0.5
    %v570 = vmul.f32 %v506, 0.5
    %v571 = vmul.f32 %v507, 0.5
    %v572 = vmul.f32 %v508, 0.5
    %v573 = vmul.f32 %v509, 0.5
    %v574 = vmul.f32 %v510, 0.5
    %v575 = vmul.f32 %v511, 0.5
    %v576 = vmul.f32 %v512, 0.5
    %v577 = vmul.f32 %v513, 0.5
    %v578 = vmul.f32 %v514, 0.5
    %v579 = vmul.f32 %v515, 0.5
    %v580 = vmul.f32 %v516, 0.5
    %v581 = vmul.f32 %v517, 0.5
    %v582 = vmul.f32 %v518, 0.5
    %v583 = vmul.f32 %v519, 0.5
    %v584 = vmul.f32 %v520, 0.5
    %v585 = vmul.f32 %v521, 0.5
    %v586 = vmul.f32 %v522, 0.5
    %v587 = vmul.f32 %v523, 0.5
    %v588 = vmul.f32 %v524, 0.5
    %v589 = vmul.f32 %v525, 0.5
    %v590 = vmul.f32 %v526, 0.5
    %v591 = vmul.f32 %v527, 0.5
    %v592 = vmul.f32 %v528, 0.5
    %v593 = vmul.f32 %v529, 0.5
    %v594 = vmul.f32 %v530, 0.5
    %v595 = vmul.f32 %v531, 0.5
    %v596 = vmul.f32 %v532, 0.5
    %v597 = vmul.f32 %v533, 0.5
    %v598 = vadd.f32 %v534, 0.5
    %v599 = vadd.f32 %v535, 0.5
    %v600 = vadd.f32 %v536, 0.5
    %v601 = vadd.f32 %v537, 0.5
    %v602 = vadd.f32 %v538, 0.5
    %v603 = vadd.f32 %v539, 0.5
    %v604 = vadd.f32 %v540, 0.5
    %v605 = vadd.f32 %v541, 0.5
    %v606 = vadd.f32 %v542, 0.5
    %v607 = vadd.f32 %v543, 0.5
    %v608 = vadd.f32 %v544, 0.5
    %v609 = vadd.f32 %v545, 0.5
    %v610 = vadd.f32 %v546, 0.5
    %v611 = vadd.f32 %v547, 0.5
    %v612 = vadd.f32 %v548, 0.5
    %v613 = vadd.f32 %v549, 0.5
    %v614 = vadd.f32 %v550, 0.5
    %v615 = vadd.f32 %v551, 0.5
    %v616 = vadd.f32 %v552, 0.5
    %v617 = vadd.f32 %v553, 0.5
    %v618 = vadd.f32 %v554, 0.5
    %v619 = vadd.f32 %v555, 0.5
    %v620 = vadd.f32 %v556, 0.5
    %v621 = vadd.f32 %v557, 0.5
    %v622 = vadd.f32 %v558, 0.5
    %v623 = vadd.f32 %v559, 0.5
    %v624 = vadd.f32 %v560, 0.5
    %v625 = vadd.f32 %v561, 0.5
    %v626 = vadd.f32 %v562, 0.5
    %v627 = vadd.f32 %v563, 0.5
    %v628 = vadd.f32 %v564, 0.5
    %v629 = vadd.f32 %v565, 0.5
    %v630 = vadd.f32 %v566, 0.5
    %v631 = vadd.f32 %v567, 0.5
    %v632 = vadd.f32 %v568, 0.5
    %v633 = vadd.f32 %v569, 0.5
    %v634 = vadd.f32 %v570, 0.5
    %v635 = vadd.f32 %v571, 0.5
    %v636 = vadd.f32 %v572, 0.5
    %v637 = vadd.f32 %v573, 0.5
    %v638 = vadd.f32 %v574, 0.5
    %v639 = vadd.f32 %v575, 0.5
    %v640 = vadd.f32 %v576, 0.5
    %v641 = vadd.f32 %v577, 0.5
    %v642 = vadd.f32 %v578, 0.5
    %v643 = vadd.f32 %v579, 0.5
    %v644 = vadd.f32 %v580, 0.5
    %v645 = vadd.f32 %v581, 0.5
    %v646 = vadd.f32 %v582, 0.5
    %v647 = vadd.f32 %v583, 0.5
    %v648 = vadd.f32 %v584, 0.5
    %v649 = vadd.f32 %v585, 0.5
    %v650 = vadd.f32 %v586, 0.5
    %v651 = vadd.f32 %v587, 0.5
    %v652 = vadd.f32 %v588, 0.5
    %v653 = vadd.f32 %v589, 0.5
    %v654 = vadd.f32 %v590, 0.5
    %v655 = vadd.f32 %v591, 0.5
    %v656 = vadd.f32 %v592, 0.5
    %v657 = vadd.f32 %v593, 0.5
    %v658 = vadd.f32 %v594, 0.5
    %v659 = vadd.f32 %v595, 0.5
    %v660 = vadd.f32 %v596, 0.5
    %v661 = vadd.f32 %v597, 0.5
    %662 = vst [vmem:[#allocation2] sm:$0xff] %v598
    %663 = vst [vmem:[#allocation2 + $0x8] sm:$0xff] %v599
    %664 = vst [vmem:[#allocation2 + $0x10] sm:$0xff] %v600
    %665 = vst [vmem:[#allocation2 + $0x18] sm:$0xff] %v601
    %666 = vst [vmem:[#allocation2 + $0x20] sm:$0xff] %v602
    %667 = vst [vmem:[#allocation2 + $0x28] sm:$0xff] %v603
    %668 = vst [vmem:[#allocation2 + $0x30] sm:$0xff] %v604
    %669 = vst [vmem:[#allocation2 + $0x38] sm:$0xff] %v605
    %670 = vst [vmem:[#allocation2 + $0x40] sm:$0xff] %v606
    %671 = vst [vmem:[#allocation2 + $0x48] sm:$0xff] %v607
    %672 = vst [vmem:[#allocation2 + $0x50] sm:$0xff] %v608
    %673 = vst [vmem:[#allocation2 + $0x58] sm:$0xff] %v609
    %674 = vst [vmem:[#allocation2 + $0x60] sm:$0xff] %v610
    %675 = vst [vmem:[#allocation2 + $0x68] sm:$0xff] %v611
    %676 = vst [vmem:[#allocation2 + $0x70] sm:$0xff] %v612
    %677 = vst [vmem:[#allocation2 + $0x78] sm:$0xff] %v613
    %678 = vst [vmem:[#allocation2 + $0x80] sm:$0xff] %v614
    %679 = vst [vmem:[#allocation2 + $0x88] sm:$0xff] %v615
    %680 = vst [vmem:[#allocation2 + $0x90] sm:$0xff] %v616
    %681 = vst [vmem:[#allocation2 + $0x98] sm:$0xff] %v617
    %682 = vst [vmem:[#allocation2 + $0xa0] sm:$0xff] %v618
    %683 = vst [vmem:[#allocation2 + $0xa8] sm:$0xff] %v619
    %684 = vst [vmem:[#allocation2 + $0xb0] sm:$0xff] %v620
    %685 = vst [vmem:[#allocation2 + $0xb8] sm:$0xff] %v621
    %686 = vst [vmem:[#allocation2 + $0xc0] sm:$0xff] %v622
    %687 = vst [vmem:[#allocation2 + $0xc8] sm:$0xff] %v623
    %688 = vst [vmem:[#allocation2 + $0xd0] sm:$0xff] %v624
    %689 = vst [vmem:[#allocation2 + $0xd8] sm:$0xff] %v625
    %690 = vst [vmem:[#allocation2 + $0xe0] sm:$0xff] %v626
    %691 = vst [vmem:[#allocation2 + $0xe8] sm:$0xff] %v627
    %692 = vst [vmem:[#allocation2 + $0xf0] sm:$0xff] %v628
    %693 = vst [vmem:[#allocation2 + $0xf8] sm:$0xff] %v629
    %694 = vst [vmem:[#allocation2 + $0x100] sm:$0xff] %v630
    %695 = vst [vmem:[#allocation2 + $0x108] sm:$0xff] %v631
    %696 = vst [vmem:[#allocation2 + $0x110] sm:$0xff] %v632
    %697 = vst [vmem:[#allocation2 + $0x118] sm:$0xff] %v633
    %698 = vst [vmem:[#allocation2 + $0x120] sm:$0xff] %v634
    %699 = vst [vmem:[#allocation2 + $0x128] sm:$0xff] %v635
    %700 = vst [vmem:[#allocation2 + $0x130] sm:$0xff] %v636
    %701 = vst [vmem:[#allocation2 + $0x138] sm:$0xff] %v637
    %702 = vst [vmem:[#allocation2 + $0x140] sm:$0xff] %v638
    %703 = vst [vmem:[#allocation2 + $0x148] sm:$0xff] %v639
    %704 = vst [vmem:[#allocation2 + $0x150] sm:$0xff] %v640
    %705 = vst [vmem:[#allocation2 + $0x158] sm:$0xff] %v641
    %706 = vst [vmem:[#allocation2 + $0x160] sm:$0xff] %v642
    %707 = vst [vmem:[#allocation2 + $0x168] sm:$0xff] %v643
    %708 = vst [vmem:[#allocation2 + $0x170] sm:$0xff] %v644
    %709 = vst [vmem:[#allocation2 + $0x178] sm:$0xff] %v645
    %710 = vst [vmem:[#allocation2 + $0x180] sm:$0xff] %v646
    %711 = vst [vmem:[#allocation2 + $0x188] sm:$0xff] %v647
    %712 = vst [vmem:[#allocation2 + $0x190] sm:$0xff] %v648
    %713 = vst [vmem:[#allocation2 + $0x198] sm:$0xff] %v649
    %714 = vst [vmem:[#allocation2 + $0x1a0] sm:$0xff] %v650
    %715 = vst [vmem:[#allocation2 + $0x1a8] sm:$0xff] %v651
    %716 = vst [vmem:[#allocation2 + $0x1b0] sm:$0xff] %v652
    %717 = vst [vmem:[#allocation2 + $0x1b8] sm:$0xff] %v653
    %718 = vst [vmem:[#allocation2 + $0x1c0] sm:$0xff] %v654
    %719 = vst [vmem:[#allocation2 + $0x1c8] sm:$0xff] %v655
    %720 = vst [vmem:[#allocation2 + $0x1d0] sm:$0xff] %v656
    %721 = vst [vmem:[#allocation2 + $0x1d8] sm:$0xff] %v657
    %722 = vst [vmem:[#allocation2 + $0x1e0] sm:$0xff] %v658
    %723 = vst [vmem:[#allocation2 + $0x1e8] sm:$0xff] %v659
    %724 = vst [vmem:[#allocation2 + $0x1f0] sm:$0xff] %v660
    %725 = vst [vmem:[#allocation2 + $0x1f8] sm:$0xff] %v661
    // Predicated region
    $region10: #{tpu_custom_call.1} parent=1 // pred_check
      _
    $region11: #{tpu_custom_call.1} parent=1 // pred_check_branch
      %727 = sbr.rel (0) target = $region13
    $region12: #{tpu_custom_call.1} parent=1 // pred_region
      %s729 = ssub.s32 8192, 8192
      %730 = vsyncadd [#allocation3], %s729
      %s731 = sshll.u32 [#allocation2], 4
      %s732 = int_to_ptr.vmem [resolvable:$true] %s731
      %737 = dma.vmem_to_hbm [thread:$0]  %s732, 8192, %s2, [#allocation3], 256, 256, 16
    $region13: #{tpu_custom_call.1} parent=1 // pred_fallthru
      _
    // Predicated region
    $region14: #{tpu_custom_call.1} parent=1 // pred_check
      _
    $region15: #{tpu_custom_call.1} parent=1 // pred_check_branch
      %739 = sbr.rel (0) target = $region17
    $region16: #{tpu_custom_call.1} parent=1 // pred_region
      %740 = dma.done [#allocation3], 8192
    $region17: #{tpu_custom_call.1} parent=1 // pred_fallthru
      _
    %741 = vsyncpa [#allocation3], 1

</llo_original>
